<compile_context>
chip_gen: v7x
topology: tpu7x:2x2x1
jax: 0.10.0
libtpu: 0.0.40
codegen_flags: <defaults>
</compile_context>

<pallas_src>
import functools

import jax
import jax.numpy as jnp
from jax.experimental import pallas as pl
from jax.experimental.pallas import tpu as pltpu


# ----------------------------------------------------------------------------
# Kernel
# ----------------------------------------------------------------------------
def _flow_kernel(xt_ref, w1_ref, b1_ref, w2_ref, b2_ref, ot_ref, *,
                 n_blocks, half, reverse):
    """Transposed layout: xt_ref / ot_ref are (dim, TB) with batch on lanes.

    w1_ref : (n_blocks*2*hidden, half)              -- all layer-1 weights, stacked
    b1_ref : (n_blocks*2*hidden, 1)
    w2_ref : (n_blocks*2*half, n_blocks*2*hidden)   -- block-diagonal layer-2
    b2_ref : (n_blocks*2*half, 1)
    Row ordering of the stacked outputs: [s_0 .. s_{nb-1}, t_0 .. t_{nb-1}].
    """
    xt = xt_ref[...]                                   # (dim, TB)
    x1 = xt[:half, :].astype(jnp.float32)              # (half, TB), passthrough
    x2 = xt[half:, :].astype(jnp.float32)              # (half, TB)

    mxu_dt = w1_ref.dtype                              # f32 or bf16 (see fuse_params)

    # Layer 1 of ALL blocks' scale+translate nets in one MXU call:
    #   (n_blocks*2*hidden, half) @ (half, TB) -> (n_blocks*2*hidden, TB)
    h = jnp.dot(w1_ref[...], x1.astype(mxu_dt),
                preferred_element_type=jnp.float32) + b1_ref[...]
    h = jnp.maximum(h, 0.0)

    # Layer 2 of ALL blocks as one block-diagonal MXU call:
    #   (n_blocks*2*half, n_blocks*2*hidden) @ (.., TB) -> (n_blocks*2*half, TB)
    st = jnp.dot(w2_ref[...], h.astype(w2_ref.dtype),
                 preferred_element_type=jnp.float32) + b2_ref[...]

    nh = n_blocks * half
    s_all = st[:nh, :]                                 # [s_0; ...; s_{nb-1}]
    t_all = st[nh:, :]                                 # [t_0; ...; t_{nb-1}]
    # One EUP pass over every block's scale.
    e_all = jnp.exp(-s_all) if reverse else jnp.exp(s_all)

    # Only the cheap coupling recurrence remains per block (unrolled).
    order = range(n_blocks - 1, -1, -1) if reverse else range(n_blocks)
    for b in order:
        e_b = e_all[b * half:(b + 1) * half, :]
        t_b = t_all[b * half:(b + 1) * half, :]
        if reverse:
            x2 = (x2 - t_b) * e_b
        else:
            x2 = x2 * e_b + t_b

    # Two direct sublane-aligned stores (no in-kernel concatenate); x1 passes
    # through untouched.
    ot_ref[pl.ds(0, half), :] = x1.astype(ot_ref.dtype)
    ot_ref[pl.ds(half, half), :] = x2.astype(ot_ref.dtype)


# ----------------------------------------------------------------------------
# Parameter fusion (one-time, host side)
# ----------------------------------------------------------------------------
def fuse_params(params, mxu_dtype=jnp.float32):
    """Build the hoisted / transposed weights the kernel consumes.

    mxu_dtype: dtype of the matmul operands (f32, or bf16 on v6e/v7x for the
    bf16-native MXU).  Biases and all elementwise math stay f32.
    """
    nb, half, hidden = params["ws1"].shape

    # Layer-1: [ws1_0 .. ws1_{nb-1}, wt1_0 .. wt1_{nb-1}], transposed so the
    # kernel computes W1 @ x1 with x1 of shape (half, TB).
    w1 = jnp.concatenate([params["ws1"], params["wt1"]], axis=0)   # (2nb, half, hidden)
    w1 = jnp.transpose(w1, (0, 2, 1)).reshape(2 * nb * hidden, half)
    b1 = jnp.concatenate([params["bs1"], params["bt1"]], axis=0).reshape(
        2 * nb * hidden, 1)

    # Layer-2: block-diagonal over [ws2_0^T .. ws2_{nb-1}^T, wt2_0^T .. wt2_{nb-1}^T].
    w2 = jnp.zeros((2 * nb * half, 2 * nb * hidden), jnp.float32)
    blocks = ([params["ws2"][b].T for b in range(nb)]
              + [params["wt2"][b].T for b in range(nb)])            # each (half, hidden)
    for i, blk in enumerate(blocks):
        w2 = w2.at[i * half:(i + 1) * half, i * hidden:(i + 1) * hidden].set(blk)
    b2 = jnp.concatenate([params["bs2"], params["bt2"]], axis=0).reshape(
        2 * nb * half, 1)

    return {
        "w1": w1.astype(mxu_dtype), "b1": b1.astype(jnp.float32),
        "w2": w2.astype(mxu_dtype), "b2": b2.astype(jnp.float32),
        "n_blocks": nb, "half": half, "hidden": hidden,
    }


# ----------------------------------------------------------------------------
# Batch tiling
# ----------------------------------------------------------------------------
def _choose_tiling(B):
    """Return (tile, padded_B).  Batch rides the lane axis, so tiles are
    either the whole (small) batch or a multiple of 256 lanes.  Keep >= 2 grid
    steps for large B (v7x has two TensorCores) and cap the tile at 2048 so
    the (n_blocks*2*hidden, TB) f32 layer-1 intermediate stays ~8 MiB."""
    if B <= 256:
        return B, B
    tb = 256
    while tb < 2048 and 4 * tb <= B:   # doubling still leaves >= 2 grid steps
        tb *= 2
    B_pad = ((B + tb - 1) // tb) * tb
    return tb, B_pad


# ----------------------------------------------------------------------------
# Wrapper
# ----------------------------------------------------------------------------
def normalizing_flow_forward(x, fused, *, reverse: bool = False):
    """x: (B, dim) float32.  fused: output of fuse_params().  Returns (B, dim)."""
    B, dim = x.shape
    half, n_blocks = fused["half"], fused["n_blocks"]
    assert dim == 2 * half

    tb, B_pad = _choose_tiling(B)

    # Batch on the 128-lane axis (layout plumbing in the wrapper, not compute).
    xt = x.T                                           # (dim, B)
    if B_pad != B:
        xt = jnp.pad(xt, ((0, 0), (0, B_pad - B)))

    grid = (B_pad // tb,)
    x_spec = pl.BlockSpec((dim, tb), lambda i: (0, i))
    w1_spec = pl.BlockSpec(fused["w1"].shape, lambda i: (0, 0))
    b1_spec = pl.BlockSpec(fused["b1"].shape, lambda i: (0, 0))
    w2_spec = pl.BlockSpec(fused["w2"].shape, lambda i: (0, 0))
    b2_spec = pl.BlockSpec(fused["b2"].shape, lambda i: (0, 0))

    kernel = functools.partial(
        _flow_kernel, n_blocks=n_blocks, half=half, reverse=reverse)

    ot = pl.pallas_call(
        kernel,
        out_shape=jax.ShapeDtypeStruct((dim, B_pad), x.dtype),
        grid_spec=pl.GridSpec(
            grid=grid,
            in_specs=[x_spec, w1_spec, b1_spec, w2_spec, b2_spec],
            out_specs=x_spec),
        compiler_params=pltpu.CompilerParams(
            dimension_semantics=("parallel",),
            vmem_limit_bytes=48 * 1024 * 1024),
    )(xt, fused["w1"], fused["b1"], fused["w2"], fused["b2"])

    return ot[:, :B].T


# ----------------------------------------------------------------------------
# Parameters + pure-JAX reference (mirrors the PyTorch module)
# ----------------------------------------------------------------------------
def make_params(key, dim, n_blocks=4, hidden=128):
    half = dim // 2
    ks = jax.random.split(key, 8)
    scale = 0.1
    # Linear stored as (in, out) so the math is x @ W + b
    # (PyTorch stores (out, in) and computes x @ W.T + b -- same math).
    return {
        "ws1": scale * jax.random.normal(ks[0], (n_blocks, half, hidden), jnp.float32),
        "bs1": scale * jax.random.normal(ks[1], (n_blocks, 1, hidden), jnp.float32),
        "ws2": scale * jax.random.normal(ks[2], (n_blocks, hidden, half), jnp.float32),
        "bs2": scale * jax.random.normal(ks[3], (n_blocks, 1, half), jnp.float32),
        "wt1": scale * jax.random.normal(ks[4], (n_blocks, half, hidden), jnp.float32),
        "bt1": scale * jax.random.normal(ks[5], (n_blocks, 1, hidden), jnp.float32),
        "wt2": scale * jax.random.normal(ks[6], (n_blocks, hidden, half), jnp.float32),
        "bt2": scale * jax.random.normal(ks[7], (n_blocks, 1, half), jnp.float32),
    }


def reference_forward(x, params, *, reverse: bool = False):
    half = x.shape[1] // 2
    x1, x2 = x[:, :half], x[:, half:]
    n_blocks = params["ws1"].shape[0]
    order = range(n_blocks - 1, -1, -1) if reverse else range(n_blocks)
    for b in order:
        h = jnp.maximum(x1 @ params["ws1"][b] + params["bs1"][b], 0.0)
        s = h @ params["ws2"][b] + params["bs2"][b]
        h = jnp.maximum(x1 @ params["wt1"][b] + params["bt1"][b], 0.0)
        t = h @ params["wt2"][b] + params["bt2"][b]
        if reverse:
            x2 = (x2 - t) * jnp.exp(-s)
        else:
            x2 = x2 * jnp.exp(s) + t
    return jnp.concatenate([x1, x2], axis=1)


# ----------------------------------------------------------------------------
# Self-test
# ----------------------------------------------------------------------------
if __name__ == "__main__":
    B, dim, n_blocks = 8, 32, 4

    key = jax.random.PRNGKey(0)
    kx, kp = jax.random.split(key)
    x = jax.random.normal(kx, (B, dim), jnp.float32)
    params = make_params(kp, dim, n_blocks=n_blocks)

    # f32 MXU path
    fused = fuse_params(params)
    out_fwd = jax.block_until_ready(normalizing_flow_forward(x, fused, reverse=False))
    ref_fwd = reference_forward(x, params, reverse=False)
    assert out_fwd.shape == (B, dim)
    assert jnp.allclose(out_fwd, ref_fwd, atol=1e-4, rtol=1e-4), "forward mismatch"

    out_rev = jax.block_until_ready(normalizing_flow_forward(x, fused, reverse=True))
    ref_rev = reference_forward(x, params, reverse=True)
    assert jnp.allclose(out_rev, ref_rev, atol=1e-4, rtol=1e-4), "reverse mismatch"

    # bf16 MXU operands (f32 accumulate, f32 coupling math) -- looser tolerance.
    fused_bf16 = fuse_params(params, mxu_dtype=jnp.bfloat16)
    out_bf16 = jax.block_until_ready(normalizing_flow_forward(x, fused_bf16, reverse=False))
    assert jnp.allclose(out_bf16, ref_fwd, atol=5e-2, rtol=5e-2), "bf16 forward mismatch"

    # Larger, non-tile-multiple batch: exercises padding + multi-step parallel grid.
    B2 = 1000
    x_big = jax.random.normal(jax.random.PRNGKey(1), (B2, dim), jnp.float32)
    out_big = jax.block_until_ready(normalizing_flow_forward(x_big, fused, reverse=False))
    ref_big = reference_forward(x_big, params, reverse=False)
    assert out_big.shape == (B2, dim)
    assert jnp.allclose(out_big, ref_big, atol=1e-4, rtol=1e-4), "tiled forward mismatch"

    print("KERNEL_OK")
</pallas_src>

<mosaic_0001>
module attributes {stable_mosaic.version = 11 : i64} {
  func.func @_flow_kernel(%arg0: i32, %arg1: memref<32x8xf32, #tpu.memory_space<vmem>>, %arg2: memref<1024x16xf32, #tpu.memory_space<vmem>>, %arg3: memref<1024x1xf32, #tpu.memory_space<vmem>>, %arg4: memref<128x1024xf32, #tpu.memory_space<vmem>>, %arg5: memref<128x1xf32, #tpu.memory_space<vmem>>, %arg6: memref<32x8xf32, #tpu.memory_space<vmem>>) attributes {dimension_semantics = [#tpu.dimension_semantics<parallel>], iteration_bounds = array<i64: 1>, scalar_prefetch = 0 : i64, scratch_operands = 0 : i64, tpu.core_type = #tpu.core_type<tc>, window_params = [{transform_indices = @transform_0, window_bounds = array<i64: 32, 8>}, {pipeline_mode = #tpu.pipeline_mode<synchronous>, transform_indices = @transform_1, window_bounds = array<i64: 1024, 16>}, {pipeline_mode = #tpu.pipeline_mode<synchronous>, transform_indices = @transform_2, window_bounds = array<i64: 1024, 1>}, {pipeline_mode = #tpu.pipeline_mode<synchronous>, transform_indices = @transform_3, window_bounds = array<i64: 128, 1024>}, {pipeline_mode = #tpu.pipeline_mode<synchronous>, transform_indices = @transform_4, window_bounds = array<i64: 128, 1>}, {transform_indices = @transform_5, window_bounds = array<i64: 32, 8>}]} {
    %c0 = arith.constant 0 : index
    %c0_0 = arith.constant 0 : index
    %0 = vector.load %arg1[%c0, %c0_0] : memref<32x8xf32, #tpu.memory_space<vmem>>, vector<32x8xf32>
    %1 = vector.extract_strided_slice %0 {offsets = [0, 0], sizes = [16, 8], strides = [1, 1]} : vector<32x8xf32> to vector<16x8xf32>
    %2 = vector.extract_strided_slice %0 {offsets = [16, 0], sizes = [16, 8], strides = [1, 1]} : vector<32x8xf32> to vector<16x8xf32>
    %c0_1 = arith.constant 0 : index
    %c0_2 = arith.constant 0 : index
    %3 = vector.load %arg2[%c0_1, %c0_2] : memref<1024x16xf32, #tpu.memory_space<vmem>>, vector<1024x16xf32>
    %cst = arith.constant dense<0.000000e+00> : vector<1024x8xf32>
    %4 = tpu.matmul %3, %1, %cst {dimension_numbers = #tpu.dot_dimension_numbers<[1], [0], [0], [1], [0, 0, 1, 1], [], []>} : vector<1024x16xf32>, vector<16x8xf32>, vector<1024x8xf32> -> vector<1024x8xf32>
    %c0_3 = arith.constant 0 : index
    %c0_4 = arith.constant 0 : index
    %5 = vector.load %arg3[%c0_3, %c0_4] : memref<1024x1xf32, #tpu.memory_space<vmem>>, vector<1024x1xf32>
    %6 = vector.broadcast %5 : vector<1024x1xf32> to vector<1024x8xf32>
    %7 = arith.addf %4, %6 : vector<1024x8xf32>
    %cst_5 = arith.constant 0.000000e+00 : f32
    %8 = vector.broadcast %cst_5 : f32 to vector<1024x8xf32>
    %9 = arith.maximumf %7, %8 : vector<1024x8xf32>
    %c0_6 = arith.constant 0 : index
    %c0_7 = arith.constant 0 : index
    %10 = vector.load %arg4[%c0_6, %c0_7] : memref<128x1024xf32, #tpu.memory_space<vmem>>, vector<128x1024xf32>
    %cst_8 = arith.constant dense<0.000000e+00> : vector<128x8xf32>
    %11 = tpu.matmul %10, %9, %cst_8 {dimension_numbers = #tpu.dot_dimension_numbers<[1], [0], [0], [1], [0, 0, 1, 1], [], []>} : vector<128x1024xf32>, vector<1024x8xf32>, vector<128x8xf32> -> vector<128x8xf32>
    %c0_9 = arith.constant 0 : index
    %c0_10 = arith.constant 0 : index
    %12 = vector.load %arg5[%c0_9, %c0_10] : memref<128x1xf32, #tpu.memory_space<vmem>>, vector<128x1xf32>
    %13 = vector.broadcast %12 : vector<128x1xf32> to vector<128x8xf32>
    %14 = arith.addf %11, %13 : vector<128x8xf32>
    %15 = vector.extract_strided_slice %14 {offsets = [0, 0], sizes = [64, 8], strides = [1, 1]} : vector<128x8xf32> to vector<64x8xf32>
    %16 = vector.extract_strided_slice %14 {offsets = [64, 0], sizes = [64, 8], strides = [1, 1]} : vector<128x8xf32> to vector<64x8xf32>
    %17 = math.exp %15 : vector<64x8xf32>
    %18 = vector.extract_strided_slice %17 {offsets = [0, 0], sizes = [16, 8], strides = [1, 1]} : vector<64x8xf32> to vector<16x8xf32>
    %19 = vector.extract_strided_slice %16 {offsets = [0, 0], sizes = [16, 8], strides = [1, 1]} : vector<64x8xf32> to vector<16x8xf32>
    %20 = arith.mulf %2, %18 : vector<16x8xf32>
    %21 = arith.addf %20, %19 : vector<16x8xf32>
    %22 = vector.extract_strided_slice %17 {offsets = [16, 0], sizes = [16, 8], strides = [1, 1]} : vector<64x8xf32> to vector<16x8xf32>
    %23 = vector.extract_strided_slice %16 {offsets = [16, 0], sizes = [16, 8], strides = [1, 1]} : vector<64x8xf32> to vector<16x8xf32>
    %24 = arith.mulf %21, %22 : vector<16x8xf32>
    %25 = arith.addf %24, %23 : vector<16x8xf32>
    %26 = vector.extract_strided_slice %17 {offsets = [32, 0], sizes = [16, 8], strides = [1, 1]} : vector<64x8xf32> to vector<16x8xf32>
    %27 = vector.extract_strided_slice %16 {offsets = [32, 0], sizes = [16, 8], strides = [1, 1]} : vector<64x8xf32> to vector<16x8xf32>
    %28 = arith.mulf %25, %26 : vector<16x8xf32>
    %29 = arith.addf %28, %27 : vector<16x8xf32>
    %30 = vector.extract_strided_slice %17 {offsets = [48, 0], sizes = [16, 8], strides = [1, 1]} : vector<64x8xf32> to vector<16x8xf32>
    %31 = vector.extract_strided_slice %16 {offsets = [48, 0], sizes = [16, 8], strides = [1, 1]} : vector<64x8xf32> to vector<16x8xf32>
    %32 = arith.mulf %29, %30 : vector<16x8xf32>
    %33 = arith.addf %32, %31 : vector<16x8xf32>
    %c0_11 = arith.constant 0 : index
    %c0_12 = arith.constant 0 : index
    %34 = vector.load %arg6[%c0_11, %c0_12] : memref<32x8xf32, #tpu.memory_space<vmem>>, vector<16x8xf32>
    tpu.vector_store %arg6[%c0_11, %c0_12], %1 {strides = array<i32>} : memref<32x8xf32, #tpu.memory_space<vmem>>, vector<16x8xf32>,
    %c16 = arith.constant 16 : index
    %c0_13 = arith.constant 0 : index
    %35 = vector.load %arg6[%c16, %c0_13] : memref<32x8xf32, #tpu.memory_space<vmem>>, vector<16x8xf32>
    tpu.vector_store %arg6[%c16, %c0_13], %33 {strides = array<i32>} : memref<32x8xf32, #tpu.memory_space<vmem>>, vector<16x8xf32>,
    return
  }
  func.func @transform_0(%arg0: i32) -> (i32, i32) {
    %c0_i32 = arith.constant 0 : i32
    %c0_i32_0 = arith.constant 0 : i32
    return %c0_i32, %arg0 : i32, i32
  }
  func.func @transform_1(%arg0: i32) -> (i32, i32) {
    %c0_i32 = arith.constant 0 : i32
    %c0_i32_0 = arith.constant 0 : i32
    %c0_i32_1 = arith.constant 0 : i32
    return %c0_i32, %c0_i32_0 : i32, i32
  }
  func.func @transform_2(%arg0: i32) -> (i32, i32) {
    %c0_i32 = arith.constant 0 : i32
    %c0_i32_0 = arith.constant 0 : i32
    %c0_i32_1 = arith.constant 0 : i32
    return %c0_i32, %c0_i32_0 : i32, i32
  }
  func.func @transform_3(%arg0: i32) -> (i32, i32) {
    %c0_i32 = arith.constant 0 : i32
    %c0_i32_0 = arith.constant 0 : i32
    %c0_i32_1 = arith.constant 0 : i32
    return %c0_i32, %c0_i32_0 : i32, i32
  }
  func.func @transform_4(%arg0: i32) -> (i32, i32) {
    %c0_i32 = arith.constant 0 : i32
    %c0_i32_0 = arith.constant 0 : i32
    %c0_i32_1 = arith.constant 0 : i32
    return %c0_i32, %c0_i32_0 : i32, i32
  }
  func.func @transform_5(%arg0: i32) -> (i32, i32) {
    %c0_i32 = arith.constant 0 : i32
    %c0_i32_0 = arith.constant 0 : i32
    return %c0_i32, %arg0 : i32, i32
  }
}

</mosaic_0001>

<llo_original>
// kernel: tpu_custom_call.1
$region0: #{tpu_custom_call.1}
  #allocation0 [shape = 'u32[]', space=smem, size = 0x4, offset = 0x4, fixed_abs, tag = 'smem constant byte address 0x4 - core index']
  #allocation1 [shape = 'u32[144,128]{1,0:T(1,128)}', space=vmem, size = 0x12000, scoped, tag = 'internal scratch']
  %s0 = inlined_call_operand.vmem [shape: f32[32,8], index: 0, kind: input, shape index: {}]
  %s1 = inlined_call_operand.vmem [shape: f32[1024,16], index: 1, kind: input, shape index: {}]
  %s2 = inlined_call_operand.vmem [shape: f32[1024,1], index: 2, kind: input, shape index: {}]
  %s3 = inlined_call_operand.vmem [shape: f32[128,1024], index: 3, kind: input, shape index: {}]
  %s4 = inlined_call_operand.vmem [shape: f32[128,1], index: 4, kind: input, shape index: {}]
  %s5 = inlined_call_operand.vmem [shape: f32[32,8], index: 5, kind: output, shape index: {}]
  %s6 = sld [smem:[#allocation0]]
  $region30: #{tpu_custom_call.1} parent=0
    _
  %s8 = ssub.s32 1, %s6
  %s9 = scalar_select 0, %s8, %s6
  // Predicated region
  $region2: #{tpu_custom_call.1} parent=0 // pred_check
    _
  $region3: #{tpu_custom_call.1} parent=0 // pred_check_branch
    %11 = sbr.rel (0) target = $region5
  $region4: #{tpu_custom_call.1} parent=0 // pred_region
    _
  $region5: #{tpu_custom_call.1} parent=0 // pred_fallthru
    _
  // Predicated region
  $region6: #{tpu_custom_call.1} parent=0 // pred_check
    _
  $region7: #{tpu_custom_call.1} parent=0 // pred_check_branch
    %13 = sbr.rel (0) target = $region9
  $region8: #{tpu_custom_call.1} parent=0 // pred_region
    _
  $region9: #{tpu_custom_call.1} parent=0 // pred_fallthru
    _
  // Predicated region
  $region10: #{tpu_custom_call.1} parent=0 // pred_check
    _
  $region11: #{tpu_custom_call.1} parent=0 // pred_check_branch
    %15 = sbr.rel (0) target = $region13
  $region12: #{tpu_custom_call.1} parent=0 // pred_region
    _
  $region13: #{tpu_custom_call.1} parent=0 // pred_fallthru
    _
  // Predicated region
  $region14: #{tpu_custom_call.1} parent=0 // pred_check
    _
  $region15: #{tpu_custom_call.1} parent=0 // pred_check_branch
    %17 = sbr.rel (0) target = $region17
  $region16: #{tpu_custom_call.1} parent=0 // pred_region
    _
  $region17: #{tpu_custom_call.1} parent=0 // pred_fallthru
    _
  // Predicated region
  $region18: #{tpu_custom_call.1} parent=0 // pred_check
    _
  $region19: #{tpu_custom_call.1} parent=0 // pred_check_branch
    %19 = sbr.rel (0) target = $region21
  $region20: #{tpu_custom_call.1} parent=0 // pred_region
    _
  $region21: #{tpu_custom_call.1} parent=0 // pred_fallthru
    _
  %v20 = vld [vmem:[%s0] sm:$0xff]
  %v21 = vld [vmem:[%s0 + $0x8] sm:$0xff]
  %v22 = vld [vmem:[%s0 + $0x10] sm:$0xff]
  %v23 = vld [vmem:[%s0 + $0x18] sm:$0xff]
  %v24 = vld [vmem:[%s1] sm:$0xff]
  %v25 = vld [vmem:[%s1 + $0x8] sm:$0xff]
  %v26 = vld [vmem:[%s1 + $0x10] sm:$0xff]
  %v27 = vld [vmem:[%s1 + $0x18] sm:$0xff]
  %v28 = vld [vmem:[%s1 + $0x20] sm:$0xff]
  %v29 = vld [vmem:[%s1 + $0x28] sm:$0xff]
  %v30 = vld [vmem:[%s1 + $0x30] sm:$0xff]
  %v31 = vld [vmem:[%s1 + $0x38] sm:$0xff]
  %v32 = vld [vmem:[%s1 + $0x40] sm:$0xff]
  %v33 = vld [vmem:[%s1 + $0x48] sm:$0xff]
  %v34 = vld [vmem:[%s1 + $0x50] sm:$0xff]
  %v35 = vld [vmem:[%s1 + $0x58] sm:$0xff]
  %v36 = vld [vmem:[%s1 + $0x60] sm:$0xff]
  %v37 = vld [vmem:[%s1 + $0x68] sm:$0xff]
  %v38 = vld [vmem:[%s1 + $0x70] sm:$0xff]
  %v39 = vld [vmem:[%s1 + $0x78] sm:$0xff]
  %v40 = vld [vmem:[%s1 + $0x80] sm:$0xff]
  %v41 = vld [vmem:[%s1 + $0x88] sm:$0xff]
  %v42 = vld [vmem:[%s1 + $0x90] sm:$0xff]
  %v43 = vld [vmem:[%s1 + $0x98] sm:$0xff]
  %v44 = vld [vmem:[%s1 + $0xa0] sm:$0xff]
  %v45 = vld [vmem:[%s1 + $0xa8] sm:$0xff]
  %v46 = vld [vmem:[%s1 + $0xb0] sm:$0xff]
  %v47 = vld [vmem:[%s1 + $0xb8] sm:$0xff]
  %v48 = vld [vmem:[%s1 + $0xc0] sm:$0xff]
  %v49 = vld [vmem:[%s1 + $0xc8] sm:$0xff]
  %v50 = vld [vmem:[%s1 + $0xd0] sm:$0xff]
  %v51 = vld [vmem:[%s1 + $0xd8] sm:$0xff]
  %v52 = vld [vmem:[%s1 + $0xe0] sm:$0xff]
  %v53 = vld [vmem:[%s1 + $0xe8] sm:$0xff]
  %v54 = vld [vmem:[%s1 + $0xf0] sm:$0xff]
  %v55 = vld [vmem:[%s1 + $0xf8] sm:$0xff]
  %v56 = vld [vmem:[%s1 + $0x100] sm:$0xff]
  %v57 = vld [vmem:[%s1 + $0x108] sm:$0xff]
  %v58 = vld [vmem:[%s1 + $0x110] sm:$0xff]
  %v59 = vld [vmem:[%s1 + $0x118] sm:$0xff]
  %v60 = vld [vmem:[%s1 + $0x120] sm:$0xff]
  %v61 = vld [vmem:[%s1 + $0x128] sm:$0xff]
  %v62 = vld [vmem:[%s1 + $0x130] sm:$0xff]
  %v63 = vld [vmem:[%s1 + $0x138] sm:$0xff]
  %v64 = vld [vmem:[%s1 + $0x140] sm:$0xff]
  %v65 = vld [vmem:[%s1 + $0x148] sm:$0xff]
  %v66 = vld [vmem:[%s1 + $0x150] sm:$0xff]
  %v67 = vld [vmem:[%s1 + $0x158] sm:$0xff]
  %v68 = vld [vmem:[%s1 + $0x160] sm:$0xff]
  %v69 = vld [vmem:[%s1 + $0x168] sm:$0xff]
  %v70 = vld [vmem:[%s1 + $0x170] sm:$0xff]
  %v71 = vld [vmem:[%s1 + $0x178] sm:$0xff]
  %v72 = vld [vmem:[%s1 + $0x180] sm:$0xff]
  %v73 = vld [vmem:[%s1 + $0x188] sm:$0xff]
  %v74 = vld [vmem:[%s1 + $0x190] sm:$0xff]
  %v75 = vld [vmem:[%s1 + $0x198] sm:$0xff]
  %v76 = vld [vmem:[%s1 + $0x1a0] sm:$0xff]
  %v77 = vld [vmem:[%s1 + $0x1a8] sm:$0xff]
  %v78 = vld [vmem:[%s1 + $0x1b0] sm:$0xff]
  %v79 = vld [vmem:[%s1 + $0x1b8] sm:$0xff]
  %v80 = vld [vmem:[%s1 + $0x1c0] sm:$0xff]
  %v81 = vld [vmem:[%s1 + $0x1c8] sm:$0xff]
  %v82 = vld [vmem:[%s1 + $0x1d0] sm:$0xff]
  %v83 = vld [vmem:[%s1 + $0x1d8] sm:$0xff]
  %v84 = vld [vmem:[%s1 + $0x1e0] sm:$0xff]
  %v85 = vld [vmem:[%s1 + $0x1e8] sm:$0xff]
  %v86 = vld [vmem:[%s1 + $0x1f0] sm:$0xff]
  %v87 = vld [vmem:[%s1 + $0x1f8] sm:$0xff]
  %v88 = vld [vmem:[%s1 + $0x200] sm:$0xff]
  %v89 = vld [vmem:[%s1 + $0x208] sm:$0xff]
  %v90 = vld [vmem:[%s1 + $0x210] sm:$0xff]
  %v91 = vld [vmem:[%s1 + $0x218] sm:$0xff]
  %v92 = vld [vmem:[%s1 + $0x220] sm:$0xff]
  %v93 = vld [vmem:[%s1 + $0x228] sm:$0xff]
  %v94 = vld [vmem:[%s1 + $0x230] sm:$0xff]
  %v95 = vld [vmem:[%s1 + $0x238] sm:$0xff]
  %v96 = vld [vmem:[%s1 + $0x240] sm:$0xff]
  %v97 = vld [vmem:[%s1 + $0x248] sm:$0xff]
  %v98 = vld [vmem:[%s1 + $0x250] sm:$0xff]
  %v99 = vld [vmem:[%s1 + $0x258] sm:$0xff]
  %v100 = vld [vmem:[%s1 + $0x260] sm:$0xff]
  %v101 = vld [vmem:[%s1 + $0x268] sm:$0xff]
  %v102 = vld [vmem:[%s1 + $0x270] sm:$0xff]
  %v103 = vld [vmem:[%s1 + $0x278] sm:$0xff]
  %v104 = vld [vmem:[%s1 + $0x280] sm:$0xff]
  %v105 = vld [vmem:[%s1 + $0x288] sm:$0xff]
  %v106 = vld [vmem:[%s1 + $0x290] sm:$0xff]
  %v107 = vld [vmem:[%s1 + $0x298] sm:$0xff]
  %v108 = vld [vmem:[%s1 + $0x2a0] sm:$0xff]
  %v109 = vld [vmem:[%s1 + $0x2a8] sm:$0xff]
  %v110 = vld [vmem:[%s1 + $0x2b0] sm:$0xff]
  %v111 = vld [vmem:[%s1 + $0x2b8] sm:$0xff]
  %v112 = vld [vmem:[%s1 + $0x2c0] sm:$0xff]
  %v113 = vld [vmem:[%s1 + $0x2c8] sm:$0xff]
  %v114 = vld [vmem:[%s1 + $0x2d0] sm:$0xff]
  %v115 = vld [vmem:[%s1 + $0x2d8] sm:$0xff]
  %v116 = vld [vmem:[%s1 + $0x2e0] sm:$0xff]
  %v117 = vld [vmem:[%s1 + $0x2e8] sm:$0xff]
  %v118 = vld [vmem:[%s1 + $0x2f0] sm:$0xff]
  %v119 = vld [vmem:[%s1 + $0x2f8] sm:$0xff]
  %v120 = vld [vmem:[%s1 + $0x300] sm:$0xff]
  %v121 = vld [vmem:[%s1 + $0x308] sm:$0xff]
  %v122 = vld [vmem:[%s1 + $0x310] sm:$0xff]
  %v123 = vld [vmem:[%s1 + $0x318] sm:$0xff]
  %v124 = vld [vmem:[%s1 + $0x320] sm:$0xff]
  %v125 = vld [vmem:[%s1 + $0x328] sm:$0xff]
  %v126 = vld [vmem:[%s1 + $0x330] sm:$0xff]
  %v127 = vld [vmem:[%s1 + $0x338] sm:$0xff]
  %v128 = vld [vmem:[%s1 + $0x340] sm:$0xff]
  %v129 = vld [vmem:[%s1 + $0x348] sm:$0xff]
  %v130 = vld [vmem:[%s1 + $0x350] sm:$0xff]
  %v131 = vld [vmem:[%s1 + $0x358] sm:$0xff]
  %v132 = vld [vmem:[%s1 + $0x360] sm:$0xff]
  %v133 = vld [vmem:[%s1 + $0x368] sm:$0xff]
  %v134 = vld [vmem:[%s1 + $0x370] sm:$0xff]
  %v135 = vld [vmem:[%s1 + $0x378] sm:$0xff]
  %v136 = vld [vmem:[%s1 + $0x380] sm:$0xff]
  %v137 = vld [vmem:[%s1 + $0x388] sm:$0xff]
  %v138 = vld [vmem:[%s1 + $0x390] sm:$0xff]
  %v139 = vld [vmem:[%s1 + $0x398] sm:$0xff]
  %v140 = vld [vmem:[%s1 + $0x3a0] sm:$0xff]
  %v141 = vld [vmem:[%s1 + $0x3a8] sm:$0xff]
  %v142 = vld [vmem:[%s1 + $0x3b0] sm:$0xff]
  %v143 = vld [vmem:[%s1 + $0x3b8] sm:$0xff]
  %v144 = vld [vmem:[%s1 + $0x3c0] sm:$0xff]
  %v145 = vld [vmem:[%s1 + $0x3c8] sm:$0xff]
  %v146 = vld [vmem:[%s1 + $0x3d0] sm:$0xff]
  %v147 = vld [vmem:[%s1 + $0x3d8] sm:$0xff]
  %v148 = vld [vmem:[%s1 + $0x3e0] sm:$0xff]
  %v149 = vld [vmem:[%s1 + $0x3e8] sm:$0xff]
  %v150 = vld [vmem:[%s1 + $0x3f0] sm:$0xff]
  %v151 = vld [vmem:[%s1 + $0x3f8] sm:$0xff]
  %v152 = vld [vmem:[%s2] sm:$0xff]
  %v153 = vld [vmem:[%s2 + $0x8] sm:$0xff]
  %v154 = vld [vmem:[%s2 + $0x10] sm:$0xff]
  %v155 = vld [vmem:[%s2 + $0x18] sm:$0xff]
  %v156 = vld [vmem:[%s2 + $0x20] sm:$0xff]
  %v157 = vld [vmem:[%s2 + $0x28] sm:$0xff]
  %v158 = vld [vmem:[%s2 + $0x30] sm:$0xff]
  %v159 = vld [vmem:[%s2 + $0x38] sm:$0xff]
  %v160 = vld [vmem:[%s2 + $0x40] sm:$0xff]
  %v161 = vld [vmem:[%s2 + $0x48] sm:$0xff]
  %v162 = vld [vmem:[%s2 + $0x50] sm:$0xff]
  %v163 = vld [vmem:[%s2 + $0x58] sm:$0xff]
  %v164 = vld [vmem:[%s2 + $0x60] sm:$0xff]
  %v165 = vld [vmem:[%s2 + $0x68] sm:$0xff]
  %v166 = vld [vmem:[%s2 + $0x70] sm:$0xff]
  %v167 = vld [vmem:[%s2 + $0x78] sm:$0xff]
  %v168 = vld [vmem:[%s2 + $0x80] sm:$0xff]
  %v169 = vld [vmem:[%s2 + $0x88] sm:$0xff]
  %v170 = vld [vmem:[%s2 + $0x90] sm:$0xff]
  %v171 = vld [vmem:[%s2 + $0x98] sm:$0xff]
  %v172 = vld [vmem:[%s2 + $0xa0] sm:$0xff]
  %v173 = vld [vmem:[%s2 + $0xa8] sm:$0xff]
  %v174 = vld [vmem:[%s2 + $0xb0] sm:$0xff]
  %v175 = vld [vmem:[%s2 + $0xb8] sm:$0xff]
  %v176 = vld [vmem:[%s2 + $0xc0] sm:$0xff]
  %v177 = vld [vmem:[%s2 + $0xc8] sm:$0xff]
  %v178 = vld [vmem:[%s2 + $0xd0] sm:$0xff]
  %v179 = vld [vmem:[%s2 + $0xd8] sm:$0xff]
  %v180 = vld [vmem:[%s2 + $0xe0] sm:$0xff]
  %v181 = vld [vmem:[%s2 + $0xe8] sm:$0xff]
  %v182 = vld [vmem:[%s2 + $0xf0] sm:$0xff]
  %v183 = vld [vmem:[%s2 + $0xf8] sm:$0xff]
  %v184 = vld [vmem:[%s2 + $0x100] sm:$0xff]
  %v185 = vld [vmem:[%s2 + $0x108] sm:$0xff]
  %v186 = vld [vmem:[%s2 + $0x110] sm:$0xff]
  %v187 = vld [vmem:[%s2 + $0x118] sm:$0xff]
  %v188 = vld [vmem:[%s2 + $0x120] sm:$0xff]
  %v189 = vld [vmem:[%s2 + $0x128] sm:$0xff]
  %v190 = vld [vmem:[%s2 + $0x130] sm:$0xff]
  %v191 = vld [vmem:[%s2 + $0x138] sm:$0xff]
  %v192 = vld [vmem:[%s2 + $0x140] sm:$0xff]
  %v193 = vld [vmem:[%s2 + $0x148] sm:$0xff]
  %v194 = vld [vmem:[%s2 + $0x150] sm:$0xff]
  %v195 = vld [vmem:[%s2 + $0x158] sm:$0xff]
  %v196 = vld [vmem:[%s2 + $0x160] sm:$0xff]
  %v197 = vld [vmem:[%s2 + $0x168] sm:$0xff]
  %v198 = vld [vmem:[%s2 + $0x170] sm:$0xff]
  %v199 = vld [vmem:[%s2 + $0x178] sm:$0xff]
  %v200 = vld [vmem:[%s2 + $0x180] sm:$0xff]
  %v201 = vld [vmem:[%s2 + $0x188] sm:$0xff]
  %v202 = vld [vmem:[%s2 + $0x190] sm:$0xff]
  %v203 = vld [vmem:[%s2 + $0x198] sm:$0xff]
  %v204 = vld [vmem:[%s2 + $0x1a0] sm:$0xff]
  %v205 = vld [vmem:[%s2 + $0x1a8] sm:$0xff]
  %v206 = vld [vmem:[%s2 + $0x1b0] sm:$0xff]
  %v207 = vld [vmem:[%s2 + $0x1b8] sm:$0xff]
  %v208 = vld [vmem:[%s2 + $0x1c0] sm:$0xff]
  %v209 = vld [vmem:[%s2 + $0x1c8] sm:$0xff]
  %v210 = vld [vmem:[%s2 + $0x1d0] sm:$0xff]
  %v211 = vld [vmem:[%s2 + $0x1d8] sm:$0xff]
  %v212 = vld [vmem:[%s2 + $0x1e0] sm:$0xff]
  %v213 = vld [vmem:[%s2 + $0x1e8] sm:$0xff]
  %v214 = vld [vmem:[%s2 + $0x1f0] sm:$0xff]
  %v215 = vld [vmem:[%s2 + $0x1f8] sm:$0xff]
  %v216 = vld [vmem:[%s2 + $0x200] sm:$0xff]
  %v217 = vld [vmem:[%s2 + $0x208] sm:$0xff]
  %v218 = vld [vmem:[%s2 + $0x210] sm:$0xff]
  %v219 = vld [vmem:[%s2 + $0x218] sm:$0xff]
  %v220 = vld [vmem:[%s2 + $0x220] sm:$0xff]
  %v221 = vld [vmem:[%s2 + $0x228] sm:$0xff]
  %v222 = vld [vmem:[%s2 + $0x230] sm:$0xff]
  %v223 = vld [vmem:[%s2 + $0x238] sm:$0xff]
  %v224 = vld [vmem:[%s2 + $0x240] sm:$0xff]
  %v225 = vld [vmem:[%s2 + $0x248] sm:$0xff]
  %v226 = vld [vmem:[%s2 + $0x250] sm:$0xff]
  %v227 = vld [vmem:[%s2 + $0x258] sm:$0xff]
  %v228 = vld [vmem:[%s2 + $0x260] sm:$0xff]
  %v229 = vld [vmem:[%s2 + $0x268] sm:$0xff]
  %v230 = vld [vmem:[%s2 + $0x270] sm:$0xff]
  %v231 = vld [vmem:[%s2 + $0x278] sm:$0xff]
  %v232 = vld [vmem:[%s2 + $0x280] sm:$0xff]
  %v233 = vld [vmem:[%s2 + $0x288] sm:$0xff]
  %v234 = vld [vmem:[%s2 + $0x290] sm:$0xff]
  %v235 = vld [vmem:[%s2 + $0x298] sm:$0xff]
  %v236 = vld [vmem:[%s2 + $0x2a0] sm:$0xff]
  %v237 = vld [vmem:[%s2 + $0x2a8] sm:$0xff]
  %v238 = vld [vmem:[%s2 + $0x2b0] sm:$0xff]
  %v239 = vld [vmem:[%s2 + $0x2b8] sm:$0xff]
  %v240 = vld [vmem:[%s2 + $0x2c0] sm:$0xff]
  %v241 = vld [vmem:[%s2 + $0x2c8] sm:$0xff]
  %v242 = vld [vmem:[%s2 + $0x2d0] sm:$0xff]
  %v243 = vld [vmem:[%s2 + $0x2d8] sm:$0xff]
  %v244 = vld [vmem:[%s2 + $0x2e0] sm:$0xff]
  %v245 = vld [vmem:[%s2 + $0x2e8] sm:$0xff]
  %v246 = vld [vmem:[%s2 + $0x2f0] sm:$0xff]
  %v247 = vld [vmem:[%s2 + $0x2f8] sm:$0xff]
  %v248 = vld [vmem:[%s2 + $0x300] sm:$0xff]
  %v249 = vld [vmem:[%s2 + $0x308] sm:$0xff]
  %v250 = vld [vmem:[%s2 + $0x310] sm:$0xff]
  %v251 = vld [vmem:[%s2 + $0x318] sm:$0xff]
  %v252 = vld [vmem:[%s2 + $0x320] sm:$0xff]
  %v253 = vld [vmem:[%s2 + $0x328] sm:$0xff]
  %v254 = vld [vmem:[%s2 + $0x330] sm:$0xff]
  %v255 = vld [vmem:[%s2 + $0x338] sm:$0xff]
  %v256 = vld [vmem:[%s2 + $0x340] sm:$0xff]
  %v257 = vld [vmem:[%s2 + $0x348] sm:$0xff]
  %v258 = vld [vmem:[%s2 + $0x350] sm:$0xff]
  %v259 = vld [vmem:[%s2 + $0x358] sm:$0xff]
  %v260 = vld [vmem:[%s2 + $0x360] sm:$0xff]
  %v261 = vld [vmem:[%s2 + $0x368] sm:$0xff]
  %v262 = vld [vmem:[%s2 + $0x370] sm:$0xff]
  %v263 = vld [vmem:[%s2 + $0x378] sm:$0xff]
  %v264 = vld [vmem:[%s2 + $0x380] sm:$0xff]
  %v265 = vld [vmem:[%s2 + $0x388] sm:$0xff]
  %v266 = vld [vmem:[%s2 + $0x390] sm:$0xff]
  %v267 = vld [vmem:[%s2 + $0x398] sm:$0xff]
  %v268 = vld [vmem:[%s2 + $0x3a0] sm:$0xff]
  %v269 = vld [vmem:[%s2 + $0x3a8] sm:$0xff]
  %v270 = vld [vmem:[%s2 + $0x3b0] sm:$0xff]
  %v271 = vld [vmem:[%s2 + $0x3b8] sm:$0xff]
  %v272 = vld [vmem:[%s2 + $0x3c0] sm:$0xff]
  %v273 = vld [vmem:[%s2 + $0x3c8] sm:$0xff]
  %v274 = vld [vmem:[%s2 + $0x3d0] sm:$0xff]
  %v275 = vld [vmem:[%s2 + $0x3d8] sm:$0xff]
  %v276 = vld [vmem:[%s2 + $0x3e0] sm:$0xff]
  %v277 = vld [vmem:[%s2 + $0x3e8] sm:$0xff]
  %v278 = vld [vmem:[%s2 + $0x3f0] sm:$0xff]
  %v279 = vld [vmem:[%s2 + $0x3f8] sm:$0xff]
  %281 = vset.pattern.permute.xlu0 0
  %282 = vperm.xlu0 %281, %v152
  %v283 = vpop.permute.xlu0 %282
  %286 = vset.pattern.permute.xlu0 0
  %287 = vperm.xlu0 %286, %v153
  %v288 = vpop.permute.xlu0 %287
  %291 = vset.pattern.permute.xlu0 0
  %292 = vperm.xlu0 %291, %v154
  %v293 = vpop.permute.xlu0 %292
  %296 = vset.pattern.permute.xlu0 0
  %297 = vperm.xlu0 %296, %v155
  %v298 = vpop.permute.xlu0 %297
  %301 = vset.pattern.permute.xlu0 0
  %302 = vperm.xlu0 %301, %v156
  %v303 = vpop.permute.xlu0 %302
  %306 = vset.pattern.permute.xlu0 0
  %307 = vperm.xlu0 %306, %v157
  %v308 = vpop.permute.xlu0 %307
  %311 = vset.pattern.permute.xlu0 0
  %312 = vperm.xlu0 %311, %v158
  %v313 = vpop.permute.xlu0 %312
  %316 = vset.pattern.permute.xlu0 0
  %317 = vperm.xlu0 %316, %v159
  %v318 = vpop.permute.xlu0 %317
  %321 = vset.pattern.permute.xlu0 0
  %322 = vperm.xlu0 %321, %v160
  %v323 = vpop.permute.xlu0 %322
  %326 = vset.pattern.permute.xlu0 0
  %327 = vperm.xlu0 %326, %v161
  %v328 = vpop.permute.xlu0 %327
  %331 = vset.pattern.permute.xlu0 0
  %332 = vperm.xlu0 %331, %v162
  %v333 = vpop.permute.xlu0 %332
  %336 = vset.pattern.permute.xlu0 0
  %337 = vperm.xlu0 %336, %v163
  %v338 = vpop.permute.xlu0 %337
  %341 = vset.pattern.permute.xlu0 0
  %342 = vperm.xlu0 %341, %v164
  %v343 = vpop.permute.xlu0 %342
  %346 = vset.pattern.permute.xlu0 0
  %347 = vperm.xlu0 %346, %v165
  %v348 = vpop.permute.xlu0 %347
  %351 = vset.pattern.permute.xlu0 0
  %352 = vperm.xlu0 %351, %v166
  %v353 = vpop.permute.xlu0 %352
  %356 = vset.pattern.permute.xlu0 0
  %357 = vperm.xlu0 %356, %v167
  %v358 = vpop.permute.xlu0 %357
  %361 = vset.pattern.permute.xlu0 0
  %362 = vperm.xlu0 %361, %v168
  %v363 = vpop.permute.xlu0 %362
  %366 = vset.pattern.permute.xlu0 0
  %367 = vperm.xlu0 %366, %v169
  %v368 = vpop.permute.xlu0 %367
  %371 = vset.pattern.permute.xlu0 0
  %372 = vperm.xlu0 %371, %v170
  %v373 = vpop.permute.xlu0 %372
  %376 = vset.pattern.permute.xlu0 0
  %377 = vperm.xlu0 %376, %v171
  %v378 = vpop.permute.xlu0 %377
  %381 = vset.pattern.permute.xlu0 0
  %382 = vperm.xlu0 %381, %v172
  %v383 = vpop.permute.xlu0 %382
  %386 = vset.pattern.permute.xlu0 0
  %387 = vperm.xlu0 %386, %v173
  %v388 = vpop.permute.xlu0 %387
  %391 = vset.pattern.permute.xlu0 0
  %392 = vperm.xlu0 %391, %v174
  %v393 = vpop.permute.xlu0 %392
  %396 = vset.pattern.permute.xlu0 0
  %397 = vperm.xlu0 %396, %v175
  %v398 = vpop.permute.xlu0 %397
  %401 = vset.pattern.permute.xlu0 0
  %402 = vperm.xlu0 %401, %v176
  %v403 = vpop.permute.xlu0 %402
  %406 = vset.pattern.permute.xlu0 0
  %407 = vperm.xlu0 %406, %v177
  %v408 = vpop.permute.xlu0 %407
  %411 = vset.pattern.permute.xlu0 0
  %412 = vperm.xlu0 %411, %v178
  %v413 = vpop.permute.xlu0 %412
  %416 = vset.pattern.permute.xlu0 0
  %417 = vperm.xlu0 %416, %v179
  %v418 = vpop.permute.xlu0 %417
  %421 = vset.pattern.permute.xlu0 0
  %422 = vperm.xlu0 %421, %v180
  %v423 = vpop.permute.xlu0 %422
  %426 = vset.pattern.permute.xlu0 0
  %427 = vperm.xlu0 %426, %v181
  %v428 = vpop.permute.xlu0 %427
  %431 = vset.pattern.permute.xlu0 0
  %432 = vperm.xlu0 %431, %v182
  %v433 = vpop.permute.xlu0 %432
  %436 = vset.pattern.permute.xlu0 0
  %437 = vperm.xlu0 %436, %v183
  %v438 = vpop.permute.xlu0 %437
  %441 = vset.pattern.permute.xlu0 0
  %442 = vperm.xlu0 %441, %v184
  %v443 = vpop.permute.xlu0 %442
  %446 = vset.pattern.permute.xlu0 0
  %447 = vperm.xlu0 %446, %v185
  %v448 = vpop.permute.xlu0 %447
  %451 = vset.pattern.permute.xlu0 0
  %452 = vperm.xlu0 %451, %v186
  %v453 = vpop.permute.xlu0 %452
  %456 = vset.pattern.permute.xlu0 0
  %457 = vperm.xlu0 %456, %v187
  %v458 = vpop.permute.xlu0 %457
  %461 = vset.pattern.permute.xlu0 0
  %462 = vperm.xlu0 %461, %v188
  %v463 = vpop.permute.xlu0 %462
  %466 = vset.pattern.permute.xlu0 0
  %467 = vperm.xlu0 %466, %v189
  %v468 = vpop.permute.xlu0 %467
  %471 = vset.pattern.permute.xlu0 0
  %472 = vperm.xlu0 %471, %v190
  %v473 = vpop.permute.xlu0 %472
  %476 = vset.pattern.permute.xlu0 0
  %477 = vperm.xlu0 %476, %v191
  %v478 = vpop.permute.xlu0 %477
  %481 = vset.pattern.permute.xlu0 0
  %482 = vperm.xlu0 %481, %v192
  %v483 = vpop.permute.xlu0 %482
  %486 = vset.pattern.permute.xlu0 0
  %487 = vperm.xlu0 %486, %v193
  %v488 = vpop.permute.xlu0 %487
  %491 = vset.pattern.permute.xlu0 0
  %492 = vperm.xlu0 %491, %v194
  %v493 = vpop.permute.xlu0 %492
  %496 = vset.pattern.permute.xlu0 0
  %497 = vperm.xlu0 %496, %v195
  %v498 = vpop.permute.xlu0 %497
  %501 = vset.pattern.permute.xlu0 0
  %502 = vperm.xlu0 %501, %v196
  %v503 = vpop.permute.xlu0 %502
  %506 = vset.pattern.permute.xlu0 0
  %507 = vperm.xlu0 %506, %v197
  %v508 = vpop.permute.xlu0 %507
  %511 = vset.pattern.permute.xlu0 0
  %512 = vperm.xlu0 %511, %v198
  %v513 = vpop.permute.xlu0 %512
  %516 = vset.pattern.permute.xlu0 0
  %517 = vperm.xlu0 %516, %v199
  %v518 = vpop.permute.xlu0 %517
  %521 = vset.pattern.permute.xlu0 0
  %522 = vperm.xlu0 %521, %v200
  %v523 = vpop.permute.xlu0 %522
  %526 = vset.pattern.permute.xlu0 0
  %527 = vperm.xlu0 %526, %v201
  %v528 = vpop.permute.xlu0 %527
  %531 = vset.pattern.permute.xlu0 0
  %532 = vperm.xlu0 %531, %v202
  %v533 = vpop.permute.xlu0 %532
  %536 = vset.pattern.permute.xlu0 0
  %537 = vperm.xlu0 %536, %v203
  %v538 = vpop.permute.xlu0 %537
  %541 = vset.pattern.permute.xlu0 0
  %542 = vperm.xlu0 %541, %v204
  %v543 = vpop.permute.xlu0 %542
  %546 = vset.pattern.permute.xlu0 0
  %547 = vperm.xlu0 %546, %v205
  %v548 = vpop.permute.xlu0 %547
  %551 = vset.pattern.permute.xlu0 0
  %552 = vperm.xlu0 %551, %v206
  %v553 = vpop.permute.xlu0 %552
  %556 = vset.pattern.permute.xlu0 0
  %557 = vperm.xlu0 %556, %v207
  %v558 = vpop.permute.xlu0 %557
  %561 = vset.pattern.permute.xlu0 0
  %562 = vperm.xlu0 %561, %v208
  %v563 = vpop.permute.xlu0 %562
  %566 = vset.pattern.permute.xlu0 0
  %567 = vperm.xlu0 %566, %v209
  %v568 = vpop.permute.xlu0 %567
  %571 = vset.pattern.permute.xlu0 0
  %572 = vperm.xlu0 %571, %v210
  %v573 = vpop.permute.xlu0 %572
  %576 = vset.pattern.permute.xlu0 0
  %577 = vperm.xlu0 %576, %v211
  %v578 = vpop.permute.xlu0 %577
  %581 = vset.pattern.permute.xlu0 0
  %582 = vperm.xlu0 %581, %v212
  %v583 = vpop.permute.xlu0 %582
  %586 = vset.pattern.permute.xlu0 0
  %587 = vperm.xlu0 %586, %v213
  %v588 = vpop.permute.xlu0 %587
  %591 = vset.pattern.permute.xlu0 0
  %592 = vperm.xlu0 %591, %v214
  %v593 = vpop.permute.xlu0 %592
  %596 = vset.pattern.permute.xlu0 0
  %597 = vperm.xlu0 %596, %v215
  %v598 = vpop.permute.xlu0 %597
  %601 = vset.pattern.permute.xlu0 0
  %602 = vperm.xlu0 %601, %v216
  %v603 = vpop.permute.xlu0 %602
  %606 = vset.pattern.permute.xlu0 0
  %607 = vperm.xlu0 %606, %v217
  %v608 = vpop.permute.xlu0 %607
  %611 = vset.pattern.permute.xlu0 0
  %612 = vperm.xlu0 %611, %v218
  %v613 = vpop.permute.xlu0 %612
  %616 = vset.pattern.permute.xlu0 0
  %617 = vperm.xlu0 %616, %v219
  %v618 = vpop.permute.xlu0 %617
  %621 = vset.pattern.permute.xlu0 0
  %622 = vperm.xlu0 %621, %v220
  %v623 = vpop.permute.xlu0 %622
  %626 = vset.pattern.permute.xlu0 0
  %627 = vperm.xlu0 %626, %v221
  %v628 = vpop.permute.xlu0 %627
  %631 = vset.pattern.permute.xlu0 0
  %632 = vperm.xlu0 %631, %v222
  %v633 = vpop.permute.xlu0 %632
  %636 = vset.pattern.permute.xlu0 0
  %637 = vperm.xlu0 %636, %v223
  %v638 = vpop.permute.xlu0 %637
  %641 = vset.pattern.permute.xlu0 0
  %642 = vperm.xlu0 %641, %v224
  %v643 = vpop.permute.xlu0 %642
  %646 = vset.pattern.permute.xlu0 0
  %647 = vperm.xlu0 %646, %v225
  %v648 = vpop.permute.xlu0 %647
  %651 = vset.pattern.permute.xlu0 0
  %652 = vperm.xlu0 %651, %v226
  %v653 = vpop.permute.xlu0 %652
  %656 = vset.pattern.permute.xlu0 0
  %657 = vperm.xlu0 %656, %v227
  %v658 = vpop.permute.xlu0 %657
  %661 = vset.pattern.permute.xlu0 0
  %662 = vperm.xlu0 %661, %v228
  %v663 = vpop.permute.xlu0 %662
  %666 = vset.pattern.permute.xlu0 0
  %667 = vperm.xlu0 %666, %v229
  %v668 = vpop.permute.xlu0 %667
  %671 = vset.pattern.permute.xlu0 0
  %672 = vperm.xlu0 %671, %v230
  %v673 = vpop.permute.xlu0 %672
  %676 = vset.pattern.permute.xlu0 0
  %677 = vperm.xlu0 %676, %v231
  %v678 = vpop.permute.xlu0 %677
  %681 = vset.pattern.permute.xlu0 0
  %682 = vperm.xlu0 %681, %v232
  %v683 = vpop.permute.xlu0 %682
  %686 = vset.pattern.permute.xlu0 0
  %687 = vperm.xlu0 %686, %v233
  %v688 = vpop.permute.xlu0 %687
  %691 = vset.pattern.permute.xlu0 0
  %692 = vperm.xlu0 %691, %v234
  %v693 = vpop.permute.xlu0 %692
  %696 = vset.pattern.permute.xlu0 0
  %697 = vperm.xlu0 %696, %v235
  %v698 = vpop.permute.xlu0 %697
  %701 = vset.pattern.permute.xlu0 0
  %702 = vperm.xlu0 %701, %v236
  %v703 = vpop.permute.xlu0 %702
  %706 = vset.pattern.permute.xlu0 0
  %707 = vperm.xlu0 %706, %v237
  %v708 = vpop.permute.xlu0 %707
  %711 = vset.pattern.permute.xlu0 0
  %712 = vperm.xlu0 %711, %v238
  %v713 = vpop.permute.xlu0 %712
  %716 = vset.pattern.permute.xlu0 0
  %717 = vperm.xlu0 %716, %v239
  %v718 = vpop.permute.xlu0 %717
  %721 = vset.pattern.permute.xlu0 0
  %722 = vperm.xlu0 %721, %v240
  %v723 = vpop.permute.xlu0 %722
  %726 = vset.pattern.permute.xlu0 0
  %727 = vperm.xlu0 %726, %v241
  %v728 = vpop.permute.xlu0 %727
  %731 = vset.pattern.permute.xlu0 0
  %732 = vperm.xlu0 %731, %v242
  %v733 = vpop.permute.xlu0 %732
  %736 = vset.pattern.permute.xlu0 0
  %737 = vperm.xlu0 %736, %v243
  %v738 = vpop.permute.xlu0 %737
  %741 = vset.pattern.permute.xlu0 0
  %742 = vperm.xlu0 %741, %v244
  %v743 = vpop.permute.xlu0 %742
  %746 = vset.pattern.permute.xlu0 0
  %747 = vperm.xlu0 %746, %v245
  %v748 = vpop.permute.xlu0 %747
  %751 = vset.pattern.permute.xlu0 0
  %752 = vperm.xlu0 %751, %v246
  %v753 = vpop.permute.xlu0 %752
  %756 = vset.pattern.permute.xlu0 0
  %757 = vperm.xlu0 %756, %v247
  %v758 = vpop.permute.xlu0 %757
  %761 = vset.pattern.permute.xlu0 0
  %762 = vperm.xlu0 %761, %v248
  %v763 = vpop.permute.xlu0 %762
  %766 = vset.pattern.permute.xlu0 0
  %767 = vperm.xlu0 %766, %v249
  %v768 = vpop.permute.xlu0 %767
  %771 = vset.pattern.permute.xlu0 0
  %772 = vperm.xlu0 %771, %v250
  %v773 = vpop.permute.xlu0 %772
  %776 = vset.pattern.permute.xlu0 0
  %777 = vperm.xlu0 %776, %v251
  %v778 = vpop.permute.xlu0 %777
  %781 = vset.pattern.permute.xlu0 0
  %782 = vperm.xlu0 %781, %v252
  %v783 = vpop.permute.xlu0 %782
  %786 = vset.pattern.permute.xlu0 0
  %787 = vperm.xlu0 %786, %v253
  %v788 = vpop.permute.xlu0 %787
  %791 = vset.pattern.permute.xlu0 0
  %792 = vperm.xlu0 %791, %v254
  %v793 = vpop.permute.xlu0 %792
  %796 = vset.pattern.permute.xlu0 0
  %797 = vperm.xlu0 %796, %v255
  %v798 = vpop.permute.xlu0 %797
  %801 = vset.pattern.permute.xlu0 0
  %802 = vperm.xlu0 %801, %v256
  %v803 = vpop.permute.xlu0 %802
  %806 = vset.pattern.permute.xlu0 0
  %807 = vperm.xlu0 %806, %v257
  %v808 = vpop.permute.xlu0 %807
  %811 = vset.pattern.permute.xlu0 0
  %812 = vperm.xlu0 %811, %v258
  %v813 = vpop.permute.xlu0 %812
  %816 = vset.pattern.permute.xlu0 0
  %817 = vperm.xlu0 %816, %v259
  %v818 = vpop.permute.xlu0 %817
  %821 = vset.pattern.permute.xlu0 0
  %822 = vperm.xlu0 %821, %v260
  %v823 = vpop.permute.xlu0 %822
  %826 = vset.pattern.permute.xlu0 0
  %827 = vperm.xlu0 %826, %v261
  %v828 = vpop.permute.xlu0 %827
  %831 = vset.pattern.permute.xlu0 0
  %832 = vperm.xlu0 %831, %v262
  %v833 = vpop.permute.xlu0 %832
  %836 = vset.pattern.permute.xlu0 0
  %837 = vperm.xlu0 %836, %v263
  %v838 = vpop.permute.xlu0 %837
  %841 = vset.pattern.permute.xlu0 0
  %842 = vperm.xlu0 %841, %v264
  %v843 = vpop.permute.xlu0 %842
  %846 = vset.pattern.permute.xlu0 0
  %847 = vperm.xlu0 %846, %v265
  %v848 = vpop.permute.xlu0 %847
  %851 = vset.pattern.permute.xlu0 0
  %852 = vperm.xlu0 %851, %v266
  %v853 = vpop.permute.xlu0 %852
  %856 = vset.pattern.permute.xlu0 0
  %857 = vperm.xlu0 %856, %v267
  %v858 = vpop.permute.xlu0 %857
  %861 = vset.pattern.permute.xlu0 0
  %862 = vperm.xlu0 %861, %v268
  %v863 = vpop.permute.xlu0 %862
  %866 = vset.pattern.permute.xlu0 0
  %867 = vperm.xlu0 %866, %v269
  %v868 = vpop.permute.xlu0 %867
  %871 = vset.pattern.permute.xlu0 0
  %872 = vperm.xlu0 %871, %v270
  %v873 = vpop.permute.xlu0 %872
  %876 = vset.pattern.permute.xlu0 0
  %877 = vperm.xlu0 %876, %v271
  %v878 = vpop.permute.xlu0 %877
  %881 = vset.pattern.permute.xlu0 0
  %882 = vperm.xlu0 %881, %v272
  %v883 = vpop.permute.xlu0 %882
  %886 = vset.pattern.permute.xlu0 0
  %887 = vperm.xlu0 %886, %v273
  %v888 = vpop.permute.xlu0 %887
  %891 = vset.pattern.permute.xlu0 0
  %892 = vperm.xlu0 %891, %v274
  %v893 = vpop.permute.xlu0 %892
  %896 = vset.pattern.permute.xlu0 0
  %897 = vperm.xlu0 %896, %v275
  %v898 = vpop.permute.xlu0 %897
  %901 = vset.pattern.permute.xlu0 0
  %902 = vperm.xlu0 %901, %v276
  %v903 = vpop.permute.xlu0 %902
  %906 = vset.pattern.permute.xlu0 0
  %907 = vperm.xlu0 %906, %v277
  %v908 = vpop.permute.xlu0 %907
  %911 = vset.pattern.permute.xlu0 0
  %912 = vperm.xlu0 %911, %v278
  %v913 = vpop.permute.xlu0 %912
  %916 = vset.pattern.permute.xlu0 0
  %917 = vperm.xlu0 %916, %v279
  %v918 = vpop.permute.xlu0 %917
  %vm920 = vcmask 130048
  %v922 = vsel %vm920, %v24, 0
  %v925 = vsel %vm920, %v25, 0
  %v928 = vsel %vm920, %v26, 0
  %v931 = vsel %vm920, %v27, 0
  %v934 = vsel %vm920, %v28, 0
  %v937 = vsel %vm920, %v29, 0
  %v940 = vsel %vm920, %v30, 0
  %v943 = vsel %vm920, %v31, 0
  %v946 = vsel %vm920, %v32, 0
  %v949 = vsel %vm920, %v33, 0
  %v952 = vsel %vm920, %v34, 0
  %v955 = vsel %vm920, %v35, 0
  %v958 = vsel %vm920, %v36, 0
  %v961 = vsel %vm920, %v37, 0
  %v964 = vsel %vm920, %v38, 0
  %v967 = vsel %vm920, %v39, 0
  %v970 = vsel %vm920, %v40, 0
  %v973 = vsel %vm920, %v41, 0
  %v976 = vsel %vm920, %v42, 0
  %v979 = vsel %vm920, %v43, 0
  %v982 = vsel %vm920, %v44, 0
  %v985 = vsel %vm920, %v45, 0
  %v988 = vsel %vm920, %v46, 0
  %v991 = vsel %vm920, %v47, 0
  %v994 = vsel %vm920, %v48, 0
  %v997 = vsel %vm920, %v49, 0
  %v1000 = vsel %vm920, %v50, 0
  %v1003 = vsel %vm920, %v51, 0
  %v1006 = vsel %vm920, %v52, 0
  %v1009 = vsel %vm920, %v53, 0
  %v1012 = vsel %vm920, %v54, 0
  %v1015 = vsel %vm920, %v55, 0
  %v1018 = vsel %vm920, %v56, 0
  %v1021 = vsel %vm920, %v57, 0
  %v1024 = vsel %vm920, %v58, 0
  %v1027 = vsel %vm920, %v59, 0
  %v1030 = vsel %vm920, %v60, 0
  %v1033 = vsel %vm920, %v61, 0
  %v1036 = vsel %vm920, %v62, 0
  %v1039 = vsel %vm920, %v63, 0
  %v1042 = vsel %vm920, %v64, 0
  %v1045 = vsel %vm920, %v65, 0
  %v1048 = vsel %vm920, %v66, 0
  %v1051 = vsel %vm920, %v67, 0
  %v1054 = vsel %vm920, %v68, 0
  %v1057 = vsel %vm920, %v69, 0
  %v1060 = vsel %vm920, %v70, 0
  %v1063 = vsel %vm920, %v71, 0
  %v1066 = vsel %vm920, %v72, 0
  %v1069 = vsel %vm920, %v73, 0
  %v1072 = vsel %vm920, %v74, 0
  %v1075 = vsel %vm920, %v75, 0
  %v1078 = vsel %vm920, %v76, 0
  %v1081 = vsel %vm920, %v77, 0
  %v1084 = vsel %vm920, %v78, 0
  %v1087 = vsel %vm920, %v79, 0
  %v1090 = vsel %vm920, %v80, 0
  %v1093 = vsel %vm920, %v81, 0
  %v1096 = vsel %vm920, %v82, 0
  %v1099 = vsel %vm920, %v83, 0
  %v1102 = vsel %vm920, %v84, 0
  %v1105 = vsel %vm920, %v85, 0
  %v1108 = vsel %vm920, %v86, 0
  %v1111 = vsel %vm920, %v87, 0
  %v1114 = vsel %vm920, %v88, 0
  %v1117 = vsel %vm920, %v89, 0
  %v1120 = vsel %vm920, %v90, 0
  %v1123 = vsel %vm920, %v91, 0
  %v1126 = vsel %vm920, %v92, 0
  %v1129 = vsel %vm920, %v93, 0
  %v1132 = vsel %vm920, %v94, 0
  %v1135 = vsel %vm920, %v95, 0
  %v1138 = vsel %vm920, %v96, 0
  %v1141 = vsel %vm920, %v97, 0
  %v1144 = vsel %vm920, %v98, 0
  %v1147 = vsel %vm920, %v99, 0
  %v1150 = vsel %vm920, %v100, 0
  %v1153 = vsel %vm920, %v101, 0
  %v1156 = vsel %vm920, %v102, 0
  %v1159 = vsel %vm920, %v103, 0
  %v1162 = vsel %vm920, %v104, 0
  %v1165 = vsel %vm920, %v105, 0
  %v1168 = vsel %vm920, %v106, 0
  %v1171 = vsel %vm920, %v107, 0
  %v1174 = vsel %vm920, %v108, 0
  %v1177 = vsel %vm920, %v109, 0
  %v1180 = vsel %vm920, %v110, 0
  %v1183 = vsel %vm920, %v111, 0
  %v1186 = vsel %vm920, %v112, 0
  %v1189 = vsel %vm920, %v113, 0
  %v1192 = vsel %vm920, %v114, 0
  %v1195 = vsel %vm920, %v115, 0
  %v1198 = vsel %vm920, %v116, 0
  %v1201 = vsel %vm920, %v117, 0
  %v1204 = vsel %vm920, %v118, 0
  %v1207 = vsel %vm920, %v119, 0
  %v1210 = vsel %vm920, %v120, 0
  %v1213 = vsel %vm920, %v121, 0
  %v1216 = vsel %vm920, %v122, 0
  %v1219 = vsel %vm920, %v123, 0
  %v1222 = vsel %vm920, %v124, 0
  %v1225 = vsel %vm920, %v125, 0
  %v1228 = vsel %vm920, %v126, 0
  %v1231 = vsel %vm920, %v127, 0
  %v1234 = vsel %vm920, %v128, 0
  %v1237 = vsel %vm920, %v129, 0
  %v1240 = vsel %vm920, %v130, 0
  %v1243 = vsel %vm920, %v131, 0
  %v1246 = vsel %vm920, %v132, 0
  %v1249 = vsel %vm920, %v133, 0
  %v1252 = vsel %vm920, %v134, 0
  %v1255 = vsel %vm920, %v135, 0
  %v1258 = vsel %vm920, %v136, 0
  %v1261 = vsel %vm920, %v137, 0
  %v1264 = vsel %vm920, %v138, 0
  %v1267 = vsel %vm920, %v139, 0
  %v1270 = vsel %vm920, %v140, 0
  %v1273 = vsel %vm920, %v141, 0
  %v1276 = vsel %vm920, %v142, 0
  %v1279 = vsel %vm920, %v143, 0
  %v1282 = vsel %vm920, %v144, 0
  %v1285 = vsel %vm920, %v145, 0
  %v1288 = vsel %vm920, %v146, 0
  %v1291 = vsel %vm920, %v147, 0
  %v1294 = vsel %vm920, %v148, 0
  %v1297 = vsel %vm920, %v149, 0
  %v1300 = vsel %vm920, %v150, 0
  %v1303 = vsel %vm920, %v151, 0
  %1305 = vmatprep.subr.mxu0 0.0
  %1306 = vmatpush1.msra.mxu0 %v20
  %1307 = vmatprep.subr.mxu0 0.0
  %1308 = vmatpush1.msra.mxu0 %v21
  %1309 = vmatprep.subr.mxu0 0.0
  %1310 = vmatpush1.msra.mxu0 0.0
  %1311 = vmatprep.subr.mxu0 0.0
  %1312 = vmatpush1.msra.mxu0 0.0
  %1313 = vmatprep.subr.mxu0 0.0
  %1314 = vmatpush1.msra.mxu0 0.0
  %1315 = vmatprep.subr.mxu0 0.0
  %1316 = vmatpush1.msra.mxu0 0.0
  %1317 = vmatprep.subr.mxu0 0.0
  %1318 = vmatpush1.msra.mxu0 0.0
  %1319 = vmatprep.subr.mxu0 0.0
  %1320 = vmatpush1.msra.mxu0 0.0
  %1321 = vmatprep.subr.mxu0 0.0
  %1322 = vmatpush1.msra.mxu0 0.0
  %1323 = vmatprep.subr.mxu0 0.0
  %1324 = vmatpush1.msra.mxu0 0.0
  %1325 = vmatprep.subr.mxu0 0.0
  %1326 = vmatpush1.msra.mxu0 0.0
  %1327 = vmatprep.subr.mxu0 0.0
  %1328 = vmatpush1.msra.mxu0 0.0
  %1329 = vmatprep.subr.mxu0 0.0
  %1330 = vmatpush1.msra.mxu0 0.0
  %1331 = vmatprep.subr.mxu0 0.0
  %1332 = vmatpush1.msra.mxu0 0.0
  %1333 = vmatprep.subr.mxu0 0.0
  %1334 = vmatpush1.msra.mxu0 0.0
  %1335 = vmatprep.subr.mxu0 0.0
  %1336 = vmatpush1.msra.mxu0 0.0
  %1337 = vmatprep.subr.mxu0 0.0
  %1338 = vmatpush1.msra.mxu0 0.0
  %1339 = vmatprep.subr.mxu0 0.0
  %1340 = vmatpush1.msra.mxu0 0.0
  %1341 = vmatprep.subr.mxu0 0.0
  %1342 = vmatpush1.msra.mxu0 0.0
  %1343 = vmatprep.subr.mxu0 0.0
  %1344 = vmatpush1.msra.mxu0 0.0
  %1345 = vmatprep.subr.mxu0 0.0
  %1346 = vmatpush1.msra.mxu0 0.0
  %1347 = vmatprep.subr.mxu0 0.0
  %1348 = vmatpush1.msra.mxu0 0.0
  %1349 = vmatprep.subr.mxu0 0.0
  %1350 = vmatpush1.msra.mxu0 0.0
  %1351 = vmatprep.subr.mxu0 0.0
  %1352 = vmatpush1.msra.mxu0 0.0
  %1353 = vmatprep.subr.mxu0 0.0
  %1354 = vmatpush1.msra.mxu0 0.0
  %1355 = vmatprep.subr.mxu0 0.0
  %1356 = vmatpush1.msra.mxu0 0.0
  %1357 = vmatprep.subr.mxu0 0.0
  %1358 = vmatpush1.msra.mxu0 0.0
  %1359 = vmatprep.subr.mxu0 0.0
  %1360 = vmatpush1.msra.mxu0 0.0
  %1361 = vmatprep.subr.mxu0 0.0
  %1362 = vmatpush1.msra.mxu0 0.0
  %1363 = vmatprep.subr.mxu0 0.0
  %1364 = vmatpush1.msra.mxu0 0.0
  %1365 = vmatprep.subr.mxu0 0.0
  %1366 = vmatpush1.msra.mxu0 0.0
  %1367 = vmatprep.subr.mxu0 0.0
  %1368 = vmatpush1.msra.mxu0 0.0
  %1369 = vmatprep.mubr.f32.mxu0 0.0
  %1370 = vmatmul.mubr.f32.gmra.mrb[0].mxu0 %v922
  %v1371 = vpop.f32.mrb[0].mxu0
  %v1372 = vadd.f32 %v283, %v1371
  %v1373 = vpop.f32.mrb[0].mxu0
  %1374 = vmatprep.mubr.f32.mxu0 0.0
  %1375 = vmatmul.mubr.f32.gmra.mrb[0].mxu0 %v925
  %v1376 = vpop.f32.mrb[0].mxu0
  %v1377 = vadd.f32 %v288, %v1376
  %v1378 = vpop.f32.mrb[0].mxu0
  %1379 = vmatprep.mubr.f32.mxu0 0.0
  %1380 = vmatmul.mubr.f32.gmra.mrb[0].mxu0 %v928
  %v1381 = vpop.f32.mrb[0].mxu0
  %v1382 = vadd.f32 %v293, %v1381
  %v1383 = vpop.f32.mrb[0].mxu0
  %1384 = vmatprep.mubr.f32.mxu0 0.0
  %1385 = vmatmul.mubr.f32.gmra.mrb[0].mxu0 %v931
  %v1386 = vpop.f32.mrb[0].mxu0
  %v1387 = vadd.f32 %v298, %v1386
  %v1388 = vpop.f32.mrb[0].mxu0
  %1389 = vmatprep.mubr.f32.mxu0 0.0
  %1390 = vmatmul.mubr.f32.gmra.mrb[0].mxu0 %v934
  %v1391 = vpop.f32.mrb[0].mxu0
  %v1392 = vadd.f32 %v303, %v1391
  %v1393 = vpop.f32.mrb[0].mxu0
  %1394 = vmatprep.mubr.f32.mxu0 0.0
  %1395 = vmatmul.mubr.f32.gmra.mrb[0].mxu0 %v937
  %v1396 = vpop.f32.mrb[0].mxu0
  %v1397 = vadd.f32 %v308, %v1396
  %v1398 = vpop.f32.mrb[0].mxu0
  %1399 = vmatprep.mubr.f32.mxu0 0.0
  %1400 = vmatmul.mubr.f32.gmra.mrb[0].mxu0 %v940
  %v1401 = vpop.f32.mrb[0].mxu0
  %v1402 = vadd.f32 %v313, %v1401
  %v1403 = vpop.f32.mrb[0].mxu0
  %1404 = vmatprep.mubr.f32.mxu0 0.0
  %1405 = vmatmul.mubr.f32.gmra.mrb[0].mxu0 %v943
  %v1406 = vpop.f32.mrb[0].mxu0
  %v1407 = vadd.f32 %v318, %v1406
  %v1408 = vpop.f32.mrb[0].mxu0
  %1409 = vmatprep.mubr.f32.mxu0 0.0
  %1410 = vmatmul.mubr.f32.gmra.mrb[0].mxu0 %v946
  %v1411 = vpop.f32.mrb[0].mxu0
  %v1412 = vadd.f32 %v323, %v1411
  %v1413 = vpop.f32.mrb[0].mxu0
  %1414 = vmatprep.mubr.f32.mxu0 0.0
  %1415 = vmatmul.mubr.f32.gmra.mrb[0].mxu0 %v949
  %v1416 = vpop.f32.mrb[0].mxu0
  %v1417 = vadd.f32 %v328, %v1416
  %v1418 = vpop.f32.mrb[0].mxu0
  %1419 = vmatprep.mubr.f32.mxu0 0.0
  %1420 = vmatmul.mubr.f32.gmra.mrb[0].mxu0 %v952
  %v1421 = vpop.f32.mrb[0].mxu0
  %v1422 = vadd.f32 %v333, %v1421
  %v1423 = vpop.f32.mrb[0].mxu0
  %1424 = vmatprep.mubr.f32.mxu0 0.0
  %1425 = vmatmul.mubr.f32.gmra.mrb[0].mxu0 %v955
  %v1426 = vpop.f32.mrb[0].mxu0
  %v1427 = vadd.f32 %v338, %v1426
  %v1428 = vpop.f32.mrb[0].mxu0
  %1429 = vmatprep.mubr.f32.mxu0 0.0
  %1430 = vmatmul.mubr.f32.gmra.mrb[0].mxu0 %v958
  %v1431 = vpop.f32.mrb[0].mxu0
  %v1432 = vadd.f32 %v343, %v1431
  %v1433 = vpop.f32.mrb[0].mxu0
  %1434 = vmatprep.mubr.f32.mxu0 0.0
  %1435 = vmatmul.mubr.f32.gmra.mrb[0].mxu0 %v961
  %v1436 = vpop.f32.mrb[0].mxu0
  %v1437 = vadd.f32 %v348, %v1436
  %v1438 = vpop.f32.mrb[0].mxu0
  %1439 = vmatprep.mubr.f32.mxu0 0.0
  %1440 = vmatmul.mubr.f32.gmra.mrb[0].mxu0 %v964
  %v1441 = vpop.f32.mrb[0].mxu0
  %v1442 = vadd.f32 %v353, %v1441
  %v1443 = vpop.f32.mrb[0].mxu0
  %1444 = vmatprep.mubr.f32.mxu0 0.0
  %1445 = vmatmul.mubr.f32.gmra.mrb[0].mxu0 %v967
  %v1446 = vpop.f32.mrb[0].mxu0
  %v1447 = vadd.f32 %v358, %v1446
  %v1448 = vpop.f32.mrb[0].mxu0
  %1449 = vmatprep.mubr.f32.mxu0 0.0
  %1450 = vmatmul.mubr.f32.gmra.mrb[0].mxu0 %v970
  %v1451 = vpop.f32.mrb[0].mxu0
  %v1452 = vadd.f32 %v363, %v1451
  %v1453 = vpop.f32.mrb[0].mxu0
  %1454 = vmatprep.mubr.f32.mxu0 0.0
  %1455 = vmatmul.mubr.f32.gmra.mrb[0].mxu0 %v973
  %v1456 = vpop.f32.mrb[0].mxu0
  %v1457 = vadd.f32 %v368, %v1456
  %v1458 = vpop.f32.mrb[0].mxu0
  %1459 = vmatprep.mubr.f32.mxu0 0.0
  %1460 = vmatmul.mubr.f32.gmra.mrb[0].mxu0 %v976
  %v1461 = vpop.f32.mrb[0].mxu0
  %v1462 = vadd.f32 %v373, %v1461
  %v1463 = vpop.f32.mrb[0].mxu0
  %1464 = vmatprep.mubr.f32.mxu0 0.0
  %1465 = vmatmul.mubr.f32.gmra.mrb[0].mxu0 %v979
  %v1466 = vpop.f32.mrb[0].mxu0
  %v1467 = vadd.f32 %v378, %v1466
  %v1468 = vpop.f32.mrb[0].mxu0
  %1469 = vmatprep.mubr.f32.mxu0 0.0
  %1470 = vmatmul.mubr.f32.gmra.mrb[0].mxu0 %v982
  %v1471 = vpop.f32.mrb[0].mxu0
  %v1472 = vadd.f32 %v383, %v1471
  %v1473 = vpop.f32.mrb[0].mxu0
  %1474 = vmatprep.mubr.f32.mxu0 0.0
  %1475 = vmatmul.mubr.f32.gmra.mrb[0].mxu0 %v985
  %v1476 = vpop.f32.mrb[0].mxu0
  %v1477 = vadd.f32 %v388, %v1476
  %v1478 = vpop.f32.mrb[0].mxu0
  %1479 = vmatprep.mubr.f32.mxu0 0.0
  %1480 = vmatmul.mubr.f32.gmra.mrb[0].mxu0 %v988
  %v1481 = vpop.f32.mrb[0].mxu0
  %v1482 = vadd.f32 %v393, %v1481
  %v1483 = vpop.f32.mrb[0].mxu0
  %1484 = vmatprep.mubr.f32.mxu0 0.0
  %1485 = vmatmul.mubr.f32.gmra.mrb[0].mxu0 %v991
  %v1486 = vpop.f32.mrb[0].mxu0
  %v1487 = vadd.f32 %v398, %v1486
  %v1488 = vpop.f32.mrb[0].mxu0
  %1489 = vmatprep.mubr.f32.mxu0 0.0
  %1490 = vmatmul.mubr.f32.gmra.mrb[0].mxu0 %v994
  %v1491 = vpop.f32.mrb[0].mxu0
  %v1492 = vadd.f32 %v403, %v1491
  %v1493 = vpop.f32.mrb[0].mxu0
  %1494 = vmatprep.mubr.f32.mxu0 0.0
  %1495 = vmatmul.mubr.f32.gmra.mrb[0].mxu0 %v997
  %v1496 = vpop.f32.mrb[0].mxu0
  %v1497 = vadd.f32 %v408, %v1496
  %v1498 = vpop.f32.mrb[0].mxu0
  %1499 = vmatprep.mubr.f32.mxu0 0.0
  %1500 = vmatmul.mubr.f32.gmra.mrb[0].mxu0 %v1000
  %v1501 = vpop.f32.mrb[0].mxu0
  %v1502 = vadd.f32 %v413, %v1501
  %v1503 = vpop.f32.mrb[0].mxu0
  %1504 = vmatprep.mubr.f32.mxu0 0.0
  %1505 = vmatmul.mubr.f32.gmra.mrb[0].mxu0 %v1003
  %v1506 = vpop.f32.mrb[0].mxu0
  %v1507 = vadd.f32 %v418, %v1506
  %v1508 = vpop.f32.mrb[0].mxu0
  %1509 = vmatprep.mubr.f32.mxu0 0.0
  %1510 = vmatmul.mubr.f32.gmra.mrb[0].mxu0 %v1006
  %v1511 = vpop.f32.mrb[0].mxu0
  %v1512 = vadd.f32 %v423, %v1511
  %v1513 = vpop.f32.mrb[0].mxu0
  %1514 = vmatprep.mubr.f32.mxu0 0.0
  %1515 = vmatmul.mubr.f32.gmra.mrb[0].mxu0 %v1009
  %v1516 = vpop.f32.mrb[0].mxu0
  %v1517 = vadd.f32 %v428, %v1516
  %v1518 = vpop.f32.mrb[0].mxu0
  %1519 = vmatprep.mubr.f32.mxu0 0.0
  %1520 = vmatmul.mubr.f32.gmra.mrb[0].mxu0 %v1012
  %v1521 = vpop.f32.mrb[0].mxu0
  %v1522 = vadd.f32 %v433, %v1521
  %v1523 = vpop.f32.mrb[0].mxu0
  %1524 = vmatprep.mubr.f32.mxu0 0.0
  %1525 = vmatmul.mubr.f32.gmra.mrb[0].mxu0 %v1015
  %v1526 = vpop.f32.mrb[0].mxu0
  %v1527 = vadd.f32 %v438, %v1526
  %v1528 = vpop.f32.mrb[0].mxu0
  %1529 = vmatprep.mubr.f32.mxu0 0.0
  %1530 = vmatmul.mubr.f32.gmra.mrb[0].mxu0 %v1018
  %v1531 = vpop.f32.mrb[0].mxu0
  %v1532 = vadd.f32 %v443, %v1531
  %v1533 = vpop.f32.mrb[0].mxu0
  %1534 = vmatprep.mubr.f32.mxu0 0.0
  %1535 = vmatmul.mubr.f32.gmra.mrb[0].mxu0 %v1021
  %v1536 = vpop.f32.mrb[0].mxu0
  %v1537 = vadd.f32 %v448, %v1536
  %v1538 = vpop.f32.mrb[0].mxu0
  %1539 = vmatprep.mubr.f32.mxu0 0.0
  %1540 = vmatmul.mubr.f32.gmra.mrb[0].mxu0 %v1024
  %v1541 = vpop.f32.mrb[0].mxu0
  %v1542 = vadd.f32 %v453, %v1541
  %v1543 = vpop.f32.mrb[0].mxu0
  %1544 = vmatprep.mubr.f32.mxu0 0.0
  %1545 = vmatmul.mubr.f32.gmra.mrb[0].mxu0 %v1027
  %v1546 = vpop.f32.mrb[0].mxu0
  %v1547 = vadd.f32 %v458, %v1546
  %v1548 = vpop.f32.mrb[0].mxu0
  %1549 = vmatprep.mubr.f32.mxu0 0.0
  %1550 = vmatmul.mubr.f32.gmra.mrb[0].mxu0 %v1030
  %v1551 = vpop.f32.mrb[0].mxu0
  %v1552 = vadd.f32 %v463, %v1551
  %v1553 = vpop.f32.mrb[0].mxu0
  %1554 = vmatprep.mubr.f32.mxu0 0.0
  %1555 = vmatmul.mubr.f32.gmra.mrb[0].mxu0 %v1033
  %v1556 = vpop.f32.mrb[0].mxu0
  %v1557 = vadd.f32 %v468, %v1556
  %v1558 = vpop.f32.mrb[0].mxu0
  %1559 = vmatprep.mubr.f32.mxu0 0.0
  %1560 = vmatmul.mubr.f32.gmra.mrb[0].mxu0 %v1036
  %v1561 = vpop.f32.mrb[0].mxu0
  %v1562 = vadd.f32 %v473, %v1561
  %v1563 = vpop.f32.mrb[0].mxu0
  %1564 = vmatprep.mubr.f32.mxu0 0.0
  %1565 = vmatmul.mubr.f32.gmra.mrb[0].mxu0 %v1039
  %v1566 = vpop.f32.mrb[0].mxu0
  %v1567 = vadd.f32 %v478, %v1566
  %v1568 = vpop.f32.mrb[0].mxu0
  %1569 = vmatprep.mubr.f32.mxu0 0.0
  %1570 = vmatmul.mubr.f32.gmra.mrb[0].mxu0 %v1042
  %v1571 = vpop.f32.mrb[0].mxu0
  %v1572 = vadd.f32 %v483, %v1571
  %v1573 = vpop.f32.mrb[0].mxu0
  %1574 = vmatprep.mubr.f32.mxu0 0.0
  %1575 = vmatmul.mubr.f32.gmra.mrb[0].mxu0 %v1045
  %v1576 = vpop.f32.mrb[0].mxu0
  %v1577 = vadd.f32 %v488, %v1576
  %v1578 = vpop.f32.mrb[0].mxu0
  %1579 = vmatprep.mubr.f32.mxu0 0.0
  %1580 = vmatmul.mubr.f32.gmra.mrb[0].mxu0 %v1048
  %v1581 = vpop.f32.mrb[0].mxu0
  %v1582 = vadd.f32 %v493, %v1581
  %v1583 = vpop.f32.mrb[0].mxu0
  %1584 = vmatprep.mubr.f32.mxu0 0.0
  %1585 = vmatmul.mubr.f32.gmra.mrb[0].mxu0 %v1051
  %v1586 = vpop.f32.mrb[0].mxu0
  %v1587 = vadd.f32 %v498, %v1586
  %v1588 = vpop.f32.mrb[0].mxu0
  %1589 = vmatprep.mubr.f32.mxu0 0.0
  %1590 = vmatmul.mubr.f32.gmra.mrb[0].mxu0 %v1054
  %v1591 = vpop.f32.mrb[0].mxu0
  %v1592 = vadd.f32 %v503, %v1591
  %v1593 = vpop.f32.mrb[0].mxu0
  %1594 = vmatprep.mubr.f32.mxu0 0.0
  %1595 = vmatmul.mubr.f32.gmra.mrb[0].mxu0 %v1057
  %v1596 = vpop.f32.mrb[0].mxu0
  %v1597 = vadd.f32 %v508, %v1596
  %v1598 = vpop.f32.mrb[0].mxu0
  %1599 = vmatprep.mubr.f32.mxu0 0.0
  %1600 = vmatmul.mubr.f32.gmra.mrb[0].mxu0 %v1060
  %v1601 = vpop.f32.mrb[0].mxu0
  %v1602 = vadd.f32 %v513, %v1601
  %v1603 = vpop.f32.mrb[0].mxu0
  %1604 = vmatprep.mubr.f32.mxu0 0.0
  %1605 = vmatmul.mubr.f32.gmra.mrb[0].mxu0 %v1063
  %v1606 = vpop.f32.mrb[0].mxu0
  %v1607 = vadd.f32 %v518, %v1606
  %v1608 = vpop.f32.mrb[0].mxu0
  %1609 = vmatprep.mubr.f32.mxu0 0.0
  %1610 = vmatmul.mubr.f32.gmra.mrb[0].mxu0 %v1066
  %v1611 = vpop.f32.mrb[0].mxu0
  %v1612 = vadd.f32 %v523, %v1611
  %v1613 = vpop.f32.mrb[0].mxu0
  %1614 = vmatprep.mubr.f32.mxu0 0.0
  %1615 = vmatmul.mubr.f32.gmra.mrb[0].mxu0 %v1069
  %v1616 = vpop.f32.mrb[0].mxu0
  %v1617 = vadd.f32 %v528, %v1616
  %v1618 = vpop.f32.mrb[0].mxu0
  %1619 = vmatprep.mubr.f32.mxu0 0.0
  %1620 = vmatmul.mubr.f32.gmra.mrb[0].mxu0 %v1072
  %v1621 = vpop.f32.mrb[0].mxu0
  %v1622 = vadd.f32 %v533, %v1621
  %v1623 = vpop.f32.mrb[0].mxu0
  %1624 = vmatprep.mubr.f32.mxu0 0.0
  %1625 = vmatmul.mubr.f32.gmra.mrb[0].mxu0 %v1075
  %v1626 = vpop.f32.mrb[0].mxu0
  %v1627 = vadd.f32 %v538, %v1626
  %v1628 = vpop.f32.mrb[0].mxu0
  %1629 = vmatprep.mubr.f32.mxu0 0.0
  %1630 = vmatmul.mubr.f32.gmra.mrb[0].mxu0 %v1078
  %v1631 = vpop.f32.mrb[0].mxu0
  %v1632 = vadd.f32 %v543, %v1631
  %v1633 = vpop.f32.mrb[0].mxu0
  %1634 = vmatprep.mubr.f32.mxu0 0.0
  %1635 = vmatmul.mubr.f32.gmra.mrb[0].mxu0 %v1081
  %v1636 = vpop.f32.mrb[0].mxu0
  %v1637 = vadd.f32 %v548, %v1636
  %v1638 = vpop.f32.mrb[0].mxu0
  %1639 = vmatprep.mubr.f32.mxu0 0.0
  %1640 = vmatmul.mubr.f32.gmra.mrb[0].mxu0 %v1084
  %v1641 = vpop.f32.mrb[0].mxu0
  %v1642 = vadd.f32 %v553, %v1641
  %v1643 = vpop.f32.mrb[0].mxu0
  %1644 = vmatprep.mubr.f32.mxu0 0.0
  %1645 = vmatmul.mubr.f32.gmra.mrb[0].mxu0 %v1087
  %v1646 = vpop.f32.mrb[0].mxu0
  %v1647 = vadd.f32 %v558, %v1646
  %v1648 = vpop.f32.mrb[0].mxu0
  %1649 = vmatprep.mubr.f32.mxu0 0.0
  %1650 = vmatmul.mubr.f32.gmra.mrb[0].mxu0 %v1090
  %v1651 = vpop.f32.mrb[0].mxu0
  %v1652 = vadd.f32 %v563, %v1651
  %v1653 = vpop.f32.mrb[0].mxu0
  %1654 = vmatprep.mubr.f32.mxu0 0.0
  %1655 = vmatmul.mubr.f32.gmra.mrb[0].mxu0 %v1093
  %v1656 = vpop.f32.mrb[0].mxu0
  %v1657 = vadd.f32 %v568, %v1656
  %v1658 = vpop.f32.mrb[0].mxu0
  %1659 = vmatprep.mubr.f32.mxu0 0.0
  %1660 = vmatmul.mubr.f32.gmra.mrb[0].mxu0 %v1096
  %v1661 = vpop.f32.mrb[0].mxu0
  %v1662 = vadd.f32 %v573, %v1661
  %v1663 = vpop.f32.mrb[0].mxu0
  %1664 = vmatprep.mubr.f32.mxu0 0.0
  %1665 = vmatmul.mubr.f32.gmra.mrb[0].mxu0 %v1099
  %v1666 = vpop.f32.mrb[0].mxu0
  %v1667 = vadd.f32 %v578, %v1666
  %v1668 = vpop.f32.mrb[0].mxu0
  %1669 = vmatprep.mubr.f32.mxu0 0.0
  %1670 = vmatmul.mubr.f32.gmra.mrb[0].mxu0 %v1102
  %v1671 = vpop.f32.mrb[0].mxu0
  %v1672 = vadd.f32 %v583, %v1671
  %v1673 = vpop.f32.mrb[0].mxu0
  %1674 = vmatprep.mubr.f32.mxu0 0.0
  %1675 = vmatmul.mubr.f32.gmra.mrb[0].mxu0 %v1105
  %v1676 = vpop.f32.mrb[0].mxu0
  %v1677 = vadd.f32 %v588, %v1676
  %v1678 = vpop.f32.mrb[0].mxu0
  %1679 = vmatprep.mubr.f32.mxu0 0.0
  %1680 = vmatmul.mubr.f32.gmra.mrb[0].mxu0 %v1108
  %v1681 = vpop.f32.mrb[0].mxu0
  %v1682 = vadd.f32 %v593, %v1681
  %v1683 = vpop.f32.mrb[0].mxu0
  %1684 = vmatprep.mubr.f32.mxu0 0.0
  %1685 = vmatmul.mubr.f32.gmra.mrb[0].mxu0 %v1111
  %v1686 = vpop.f32.mrb[0].mxu0
  %v1687 = vadd.f32 %v598, %v1686
  %v1688 = vpop.f32.mrb[0].mxu0
  %1689 = vmatprep.mubr.f32.mxu0 0.0
  %1690 = vmatmul.mubr.f32.gmra.mrb[0].mxu0 %v1114
  %v1691 = vpop.f32.mrb[0].mxu0
  %v1692 = vadd.f32 %v603, %v1691
  %v1693 = vpop.f32.mrb[0].mxu0
  %1694 = vmatprep.mubr.f32.mxu0 0.0
  %1695 = vmatmul.mubr.f32.gmra.mrb[0].mxu0 %v1117
  %v1696 = vpop.f32.mrb[0].mxu0
  %v1697 = vadd.f32 %v608, %v1696
  %v1698 = vpop.f32.mrb[0].mxu0
  %1699 = vmatprep.mubr.f32.mxu0 0.0
  %1700 = vmatmul.mubr.f32.gmra.mrb[0].mxu0 %v1120
  %v1701 = vpop.f32.mrb[0].mxu0
  %v1702 = vadd.f32 %v613, %v1701
  %v1703 = vpop.f32.mrb[0].mxu0
  %1704 = vmatprep.mubr.f32.mxu0 0.0
  %1705 = vmatmul.mubr.f32.gmra.mrb[0].mxu0 %v1123
  %v1706 = vpop.f32.mrb[0].mxu0
  %v1707 = vadd.f32 %v618, %v1706
  %v1708 = vpop.f32.mrb[0].mxu0
  %1709 = vmatprep.mubr.f32.mxu0 0.0
  %1710 = vmatmul.mubr.f32.gmra.mrb[0].mxu0 %v1126
  %v1711 = vpop.f32.mrb[0].mxu0
  %v1712 = vadd.f32 %v623, %v1711
  %v1713 = vpop.f32.mrb[0].mxu0
  %1714 = vmatprep.mubr.f32.mxu0 0.0
  %1715 = vmatmul.mubr.f32.gmra.mrb[0].mxu0 %v1129
  %v1716 = vpop.f32.mrb[0].mxu0
  %v1717 = vadd.f32 %v628, %v1716
  %v1718 = vpop.f32.mrb[0].mxu0
  %1719 = vmatprep.mubr.f32.mxu0 0.0
  %1720 = vmatmul.mubr.f32.gmra.mrb[0].mxu0 %v1132
  %v1721 = vpop.f32.mrb[0].mxu0
  %v1722 = vadd.f32 %v633, %v1721
  %v1723 = vpop.f32.mrb[0].mxu0
  %1724 = vmatprep.mubr.f32.mxu0 0.0
  %1725 = vmatmul.mubr.f32.gmra.mrb[0].mxu0 %v1135
  %v1726 = vpop.f32.mrb[0].mxu0
  %v1727 = vadd.f32 %v638, %v1726
  %v1728 = vpop.f32.mrb[0].mxu0
  %1729 = vmatprep.mubr.f32.mxu0 0.0
  %1730 = vmatmul.mubr.f32.gmra.mrb[0].mxu0 %v1138
  %v1731 = vpop.f32.mrb[0].mxu0
  %v1732 = vadd.f32 %v643, %v1731
  %v1733 = vpop.f32.mrb[0].mxu0
  %1734 = vmatprep.mubr.f32.mxu0 0.0
  %1735 = vmatmul.mubr.f32.gmra.mrb[0].mxu0 %v1141
  %v1736 = vpop.f32.mrb[0].mxu0
  %v1737 = vadd.f32 %v648, %v1736
  %v1738 = vpop.f32.mrb[0].mxu0
  %1739 = vmatprep.mubr.f32.mxu0 0.0
  %1740 = vmatmul.mubr.f32.gmra.mrb[0].mxu0 %v1144
  %v1741 = vpop.f32.mrb[0].mxu0
  %v1742 = vadd.f32 %v653, %v1741
  %v1743 = vpop.f32.mrb[0].mxu0
  %1744 = vmatprep.mubr.f32.mxu0 0.0
  %1745 = vmatmul.mubr.f32.gmra.mrb[0].mxu0 %v1147
  %v1746 = vpop.f32.mrb[0].mxu0
  %v1747 = vadd.f32 %v658, %v1746
  %v1748 = vpop.f32.mrb[0].mxu0
  %1749 = vmatprep.mubr.f32.mxu0 0.0
  %1750 = vmatmul.mubr.f32.gmra.mrb[0].mxu0 %v1150
  %v1751 = vpop.f32.mrb[0].mxu0
  %v1752 = vadd.f32 %v663, %v1751
  %v1753 = vpop.f32.mrb[0].mxu0
  %1754 = vmatprep.mubr.f32.mxu0 0.0
  %1755 = vmatmul.mubr.f32.gmra.mrb[0].mxu0 %v1153
  %v1756 = vpop.f32.mrb[0].mxu0
  %v1757 = vadd.f32 %v668, %v1756
  %v1758 = vpop.f32.mrb[0].mxu0
  %1759 = vmatprep.mubr.f32.mxu0 0.0
  %1760 = vmatmul.mubr.f32.gmra.mrb[0].mxu0 %v1156
  %v1761 = vpop.f32.mrb[0].mxu0
  %v1762 = vadd.f32 %v673, %v1761
  %v1763 = vpop.f32.mrb[0].mxu0
  %1764 = vmatprep.mubr.f32.mxu0 0.0
  %1765 = vmatmul.mubr.f32.gmra.mrb[0].mxu0 %v1159
  %v1766 = vpop.f32.mrb[0].mxu0
  %v1767 = vadd.f32 %v678, %v1766
  %v1768 = vpop.f32.mrb[0].mxu0
  %1769 = vmatprep.mubr.f32.mxu0 0.0
  %1770 = vmatmul.mubr.f32.gmra.mrb[0].mxu0 %v1162
  %v1771 = vpop.f32.mrb[0].mxu0
  %v1772 = vadd.f32 %v683, %v1771
  %v1773 = vpop.f32.mrb[0].mxu0
  %1774 = vmatprep.mubr.f32.mxu0 0.0
  %1775 = vmatmul.mubr.f32.gmra.mrb[0].mxu0 %v1165
  %v1776 = vpop.f32.mrb[0].mxu0
  %v1777 = vadd.f32 %v688, %v1776
  %v1778 = vpop.f32.mrb[0].mxu0
  %1779 = vmatprep.mubr.f32.mxu0 0.0
  %1780 = vmatmul.mubr.f32.gmra.mrb[0].mxu0 %v1168
  %v1781 = vpop.f32.mrb[0].mxu0
  %v1782 = vadd.f32 %v693, %v1781
  %v1783 = vpop.f32.mrb[0].mxu0
  %1784 = vmatprep.mubr.f32.mxu0 0.0
  %1785 = vmatmul.mubr.f32.gmra.mrb[0].mxu0 %v1171
  %v1786 = vpop.f32.mrb[0].mxu0
  %v1787 = vadd.f32 %v698, %v1786
  %v1788 = vpop.f32.mrb[0].mxu0
  %1789 = vmatprep.mubr.f32.mxu0 0.0
  %1790 = vmatmul.mubr.f32.gmra.mrb[0].mxu0 %v1174
  %v1791 = vpop.f32.mrb[0].mxu0
  %v1792 = vadd.f32 %v703, %v1791
  %v1793 = vpop.f32.mrb[0].mxu0
  %1794 = vmatprep.mubr.f32.mxu0 0.0
  %1795 = vmatmul.mubr.f32.gmra.mrb[0].mxu0 %v1177
  %v1796 = vpop.f32.mrb[0].mxu0
  %v1797 = vadd.f32 %v708, %v1796
  %v1798 = vpop.f32.mrb[0].mxu0
  %1799 = vmatprep.mubr.f32.mxu0 0.0
  %1800 = vmatmul.mubr.f32.gmra.mrb[0].mxu0 %v1180
  %v1801 = vpop.f32.mrb[0].mxu0
  %v1802 = vadd.f32 %v713, %v1801
  %v1803 = vpop.f32.mrb[0].mxu0
  %1804 = vmatprep.mubr.f32.mxu0 0.0
  %1805 = vmatmul.mubr.f32.gmra.mrb[0].mxu0 %v1183
  %v1806 = vpop.f32.mrb[0].mxu0
  %v1807 = vadd.f32 %v718, %v1806
  %v1808 = vpop.f32.mrb[0].mxu0
  %1809 = vmatprep.mubr.f32.mxu0 0.0
  %1810 = vmatmul.mubr.f32.gmra.mrb[0].mxu0 %v1186
  %v1811 = vpop.f32.mrb[0].mxu0
  %v1812 = vadd.f32 %v723, %v1811
  %v1813 = vpop.f32.mrb[0].mxu0
  %1814 = vmatprep.mubr.f32.mxu0 0.0
  %1815 = vmatmul.mubr.f32.gmra.mrb[0].mxu0 %v1189
  %v1816 = vpop.f32.mrb[0].mxu0
  %v1817 = vadd.f32 %v728, %v1816
  %v1818 = vpop.f32.mrb[0].mxu0
  %1819 = vmatprep.mubr.f32.mxu0 0.0
  %1820 = vmatmul.mubr.f32.gmra.mrb[0].mxu0 %v1192
  %v1821 = vpop.f32.mrb[0].mxu0
  %v1822 = vadd.f32 %v733, %v1821
  %v1823 = vpop.f32.mrb[0].mxu0
  %1824 = vmatprep.mubr.f32.mxu0 0.0
  %1825 = vmatmul.mubr.f32.gmra.mrb[0].mxu0 %v1195
  %v1826 = vpop.f32.mrb[0].mxu0
  %v1827 = vadd.f32 %v738, %v1826
  %v1828 = vpop.f32.mrb[0].mxu0
  %1829 = vmatprep.mubr.f32.mxu0 0.0
  %1830 = vmatmul.mubr.f32.gmra.mrb[0].mxu0 %v1198
  %v1831 = vpop.f32.mrb[0].mxu0
  %v1832 = vadd.f32 %v743, %v1831
  %v1833 = vpop.f32.mrb[0].mxu0
  %1834 = vmatprep.mubr.f32.mxu0 0.0
  %1835 = vmatmul.mubr.f32.gmra.mrb[0].mxu0 %v1201
  %v1836 = vpop.f32.mrb[0].mxu0
  %v1837 = vadd.f32 %v748, %v1836
  %v1838 = vpop.f32.mrb[0].mxu0
  %1839 = vmatprep.mubr.f32.mxu0 0.0
  %1840 = vmatmul.mubr.f32.gmra.mrb[0].mxu0 %v1204
  %v1841 = vpop.f32.mrb[0].mxu0
  %v1842 = vadd.f32 %v753, %v1841
  %v1843 = vpop.f32.mrb[0].mxu0
  %1844 = vmatprep.mubr.f32.mxu0 0.0
  %1845 = vmatmul.mubr.f32.gmra.mrb[0].mxu0 %v1207
  %v1846 = vpop.f32.mrb[0].mxu0
  %v1847 = vadd.f32 %v758, %v1846
  %v1848 = vpop.f32.mrb[0].mxu0
  %1849 = vmatprep.mubr.f32.mxu0 0.0
  %1850 = vmatmul.mubr.f32.gmra.mrb[0].mxu0 %v1210
  %v1851 = vpop.f32.mrb[0].mxu0
  %v1852 = vadd.f32 %v763, %v1851
  %v1853 = vpop.f32.mrb[0].mxu0
  %1854 = vmatprep.mubr.f32.mxu0 0.0
  %1855 = vmatmul.mubr.f32.gmra.mrb[0].mxu0 %v1213
  %v1856 = vpop.f32.mrb[0].mxu0
  %v1857 = vadd.f32 %v768, %v1856
  %v1858 = vpop.f32.mrb[0].mxu0
  %1859 = vmatprep.mubr.f32.mxu0 0.0
  %1860 = vmatmul.mubr.f32.gmra.mrb[0].mxu0 %v1216
  %v1861 = vpop.f32.mrb[0].mxu0
  %v1862 = vadd.f32 %v773, %v1861
  %v1863 = vpop.f32.mrb[0].mxu0
  %1864 = vmatprep.mubr.f32.mxu0 0.0
  %1865 = vmatmul.mubr.f32.gmra.mrb[0].mxu0 %v1219
  %v1866 = vpop.f32.mrb[0].mxu0
  %v1867 = vadd.f32 %v778, %v1866
  %v1868 = vpop.f32.mrb[0].mxu0
  %1869 = vmatprep.mubr.f32.mxu0 0.0
  %1870 = vmatmul.mubr.f32.gmra.mrb[0].mxu0 %v1222
  %v1871 = vpop.f32.mrb[0].mxu0
  %v1872 = vadd.f32 %v783, %v1871
  %v1873 = vpop.f32.mrb[0].mxu0
  %1874 = vmatprep.mubr.f32.mxu0 0.0
  %1875 = vmatmul.mubr.f32.gmra.mrb[0].mxu0 %v1225
  %v1876 = vpop.f32.mrb[0].mxu0
  %v1877 = vadd.f32 %v788, %v1876
  %v1878 = vpop.f32.mrb[0].mxu0
  %1879 = vmatprep.mubr.f32.mxu0 0.0
  %1880 = vmatmul.mubr.f32.gmra.mrb[0].mxu0 %v1228
  %v1881 = vpop.f32.mrb[0].mxu0
  %v1882 = vadd.f32 %v793, %v1881
  %v1883 = vpop.f32.mrb[0].mxu0
  %1884 = vmatprep.mubr.f32.mxu0 0.0
  %1885 = vmatmul.mubr.f32.gmra.mrb[0].mxu0 %v1231
  %v1886 = vpop.f32.mrb[0].mxu0
  %v1887 = vadd.f32 %v798, %v1886
  %v1888 = vpop.f32.mrb[0].mxu0
  %1889 = vmatprep.mubr.f32.mxu0 0.0
  %1890 = vmatmul.mubr.f32.gmra.mrb[0].mxu0 %v1234
  %v1891 = vpop.f32.mrb[0].mxu0
  %v1892 = vadd.f32 %v803, %v1891
  %v1893 = vpop.f32.mrb[0].mxu0
  %1894 = vmatprep.mubr.f32.mxu0 0.0
  %1895 = vmatmul.mubr.f32.gmra.mrb[0].mxu0 %v1237
  %v1896 = vpop.f32.mrb[0].mxu0
  %v1897 = vadd.f32 %v808, %v1896
  %v1898 = vpop.f32.mrb[0].mxu0
  %1899 = vmatprep.mubr.f32.mxu0 0.0
  %1900 = vmatmul.mubr.f32.gmra.mrb[0].mxu0 %v1240
  %v1901 = vpop.f32.mrb[0].mxu0
  %v1902 = vadd.f32 %v813, %v1901
  %v1903 = vpop.f32.mrb[0].mxu0
  %1904 = vmatprep.mubr.f32.mxu0 0.0
  %1905 = vmatmul.mubr.f32.gmra.mrb[0].mxu0 %v1243
  %v1906 = vpop.f32.mrb[0].mxu0
  %v1907 = vadd.f32 %v818, %v1906
  %v1908 = vpop.f32.mrb[0].mxu0
  %1909 = vmatprep.mubr.f32.mxu0 0.0
  %1910 = vmatmul.mubr.f32.gmra.mrb[0].mxu0 %v1246
  %v1911 = vpop.f32.mrb[0].mxu0
  %v1912 = vadd.f32 %v823, %v1911
  %v1913 = vpop.f32.mrb[0].mxu0
  %1914 = vmatprep.mubr.f32.mxu0 0.0
  %1915 = vmatmul.mubr.f32.gmra.mrb[0].mxu0 %v1249
  %v1916 = vpop.f32.mrb[0].mxu0
  %v1917 = vadd.f32 %v828, %v1916
  %v1918 = vpop.f32.mrb[0].mxu0
  %1919 = vmatprep.mubr.f32.mxu0 0.0
  %1920 = vmatmul.mubr.f32.gmra.mrb[0].mxu0 %v1252
  %v1921 = vpop.f32.mrb[0].mxu0
  %v1922 = vadd.f32 %v833, %v1921
  %v1923 = vpop.f32.mrb[0].mxu0
  %1924 = vmatprep.mubr.f32.mxu0 0.0
  %1925 = vmatmul.mubr.f32.gmra.mrb[0].mxu0 %v1255
  %v1926 = vpop.f32.mrb[0].mxu0
  %v1927 = vadd.f32 %v838, %v1926
  %v1928 = vpop.f32.mrb[0].mxu0
  %1929 = vmatprep.mubr.f32.mxu0 0.0
  %1930 = vmatmul.mubr.f32.gmra.mrb[0].mxu0 %v1258
  %v1931 = vpop.f32.mrb[0].mxu0
  %v1932 = vadd.f32 %v843, %v1931
  %v1933 = vpop.f32.mrb[0].mxu0
  %1934 = vmatprep.mubr.f32.mxu0 0.0
  %1935 = vmatmul.mubr.f32.gmra.mrb[0].mxu0 %v1261
  %v1936 = vpop.f32.mrb[0].mxu0
  %v1937 = vadd.f32 %v848, %v1936
  %v1938 = vpop.f32.mrb[0].mxu0
  %1939 = vmatprep.mubr.f32.mxu0 0.0
  %1940 = vmatmul.mubr.f32.gmra.mrb[0].mxu0 %v1264
  %v1941 = vpop.f32.mrb[0].mxu0
  %v1942 = vadd.f32 %v853, %v1941
  %v1943 = vpop.f32.mrb[0].mxu0
  %1944 = vmatprep.mubr.f32.mxu0 0.0
  %1945 = vmatmul.mubr.f32.gmra.mrb[0].mxu0 %v1267
  %v1946 = vpop.f32.mrb[0].mxu0
  %v1947 = vadd.f32 %v858, %v1946
  %v1948 = vpop.f32.mrb[0].mxu0
  %1949 = vmatprep.mubr.f32.mxu0 0.0
  %1950 = vmatmul.mubr.f32.gmra.mrb[0].mxu0 %v1270
  %v1951 = vpop.f32.mrb[0].mxu0
  %v1952 = vadd.f32 %v863, %v1951
  %v1953 = vpop.f32.mrb[0].mxu0
  %1954 = vmatprep.mubr.f32.mxu0 0.0
  %1955 = vmatmul.mubr.f32.gmra.mrb[0].mxu0 %v1273
  %v1956 = vpop.f32.mrb[0].mxu0
  %v1957 = vadd.f32 %v868, %v1956
  %v1958 = vpop.f32.mrb[0].mxu0
  %1959 = vmatprep.mubr.f32.mxu0 0.0
  %1960 = vmatmul.mubr.f32.gmra.mrb[0].mxu0 %v1276
  %v1961 = vpop.f32.mrb[0].mxu0
  %v1962 = vadd.f32 %v873, %v1961
  %v1963 = vpop.f32.mrb[0].mxu0
  %1964 = vmatprep.mubr.f32.mxu0 0.0
  %1965 = vmatmul.mubr.f32.gmra.mrb[0].mxu0 %v1279
  %v1966 = vpop.f32.mrb[0].mxu0
  %v1967 = vadd.f32 %v878, %v1966
  %v1968 = vpop.f32.mrb[0].mxu0
  %1969 = vmatprep.mubr.f32.mxu0 0.0
  %1970 = vmatmul.mubr.f32.gmra.mrb[0].mxu0 %v1282
  %v1971 = vpop.f32.mrb[0].mxu0
  %v1972 = vadd.f32 %v883, %v1971
  %v1973 = vpop.f32.mrb[0].mxu0
  %1974 = vmatprep.mubr.f32.mxu0 0.0
  %1975 = vmatmul.mubr.f32.gmra.mrb[0].mxu0 %v1285
  %v1976 = vpop.f32.mrb[0].mxu0
  %v1977 = vadd.f32 %v888, %v1976
  %v1978 = vpop.f32.mrb[0].mxu0
  %1979 = vmatprep.mubr.f32.mxu0 0.0
  %1980 = vmatmul.mubr.f32.gmra.mrb[0].mxu0 %v1288
  %v1981 = vpop.f32.mrb[0].mxu0
  %v1982 = vadd.f32 %v893, %v1981
  %v1983 = vpop.f32.mrb[0].mxu0
  %1984 = vmatprep.mubr.f32.mxu0 0.0
  %1985 = vmatmul.mubr.f32.gmra.mrb[0].mxu0 %v1291
  %v1986 = vpop.f32.mrb[0].mxu0
  %v1987 = vadd.f32 %v898, %v1986
  %v1988 = vpop.f32.mrb[0].mxu0
  %1989 = vmatprep.mubr.f32.mxu0 0.0
  %1990 = vmatmul.mubr.f32.gmra.mrb[0].mxu0 %v1294
  %v1991 = vpop.f32.mrb[0].mxu0
  %v1992 = vadd.f32 %v903, %v1991
  %v1993 = vpop.f32.mrb[0].mxu0
  %1994 = vmatprep.mubr.f32.mxu0 0.0
  %1995 = vmatmul.mubr.f32.gmra.mrb[0].mxu0 %v1297
  %v1996 = vpop.f32.mrb[0].mxu0
  %v1997 = vadd.f32 %v908, %v1996
  %v1998 = vpop.f32.mrb[0].mxu0
  %1999 = vmatprep.mubr.f32.mxu0 0.0
  %2000 = vmatmul.mubr.f32.gmra.mrb[0].mxu0 %v1300
  %v2001 = vpop.f32.mrb[0].mxu0
  %v2002 = vadd.f32 %v913, %v2001
  %v2003 = vpop.f32.mrb[0].mxu0
  %2004 = vmatprep.mubr.f32.mxu0 0.0
  %2005 = vmatmul.mubr.f32.gmra.mrb[0].mxu0 %v1303
  %v2006 = vpop.f32.mrb[0].mxu0
  %v2007 = vadd.f32 %v918, %v2006
  %v2008 = vpop.f32.mrb[0].mxu0
  %2009 = vdwg.mxu0
  %v2010 = vmax.f32 %v1372, 0.0
  %v2011 = vmax.f32 %v1377, 0.0
  %v2012 = vmax.f32 %v1382, 0.0
  %v2013 = vmax.f32 %v1387, 0.0
  %v2014 = vmax.f32 %v1392, 0.0
  %v2015 = vmax.f32 %v1397, 0.0
  %v2016 = vmax.f32 %v1402, 0.0
  %v2017 = vmax.f32 %v1407, 0.0
  %v2018 = vmax.f32 %v1412, 0.0
  %v2019 = vmax.f32 %v1417, 0.0
  %v2020 = vmax.f32 %v1422, 0.0
  %v2021 = vmax.f32 %v1427, 0.0
  %v2022 = vmax.f32 %v1432, 0.0
  %v2023 = vmax.f32 %v1437, 0.0
  %v2024 = vmax.f32 %v1442, 0.0
  %v2025 = vmax.f32 %v1447, 0.0
  %v2026 = vmax.f32 %v1452, 0.0
  %v2027 = vmax.f32 %v1457, 0.0
  %v2028 = vmax.f32 %v1462, 0.0
  %v2029 = vmax.f32 %v1467, 0.0
  %v2030 = vmax.f32 %v1472, 0.0
  %v2031 = vmax.f32 %v1477, 0.0
  %v2032 = vmax.f32 %v1482, 0.0
  %v2033 = vmax.f32 %v1487, 0.0
  %v2034 = vmax.f32 %v1492, 0.0
  %v2035 = vmax.f32 %v1497, 0.0
  %v2036 = vmax.f32 %v1502, 0.0
  %v2037 = vmax.f32 %v1507, 0.0
  %v2038 = vmax.f32 %v1512, 0.0
  %v2039 = vmax.f32 %v1517, 0.0
  %v2040 = vmax.f32 %v1522, 0.0
  %v2041 = vmax.f32 %v1527, 0.0
  %v2042 = vmax.f32 %v1532, 0.0
  %v2043 = vmax.f32 %v1537, 0.0
  %v2044 = vmax.f32 %v1542, 0.0
  %v2045 = vmax.f32 %v1547, 0.0
  %v2046 = vmax.f32 %v1552, 0.0
  %v2047 = vmax.f32 %v1557, 0.0
  %v2048 = vmax.f32 %v1562, 0.0
  %v2049 = vmax.f32 %v1567, 0.0
  %v2050 = vmax.f32 %v1572, 0.0
  %v2051 = vmax.f32 %v1577, 0.0
  %v2052 = vmax.f32 %v1582, 0.0
  %v2053 = vmax.f32 %v1587, 0.0
  %v2054 = vmax.f32 %v1592, 0.0
  %v2055 = vmax.f32 %v1597, 0.0
  %v2056 = vmax.f32 %v1602, 0.0
  %v2057 = vmax.f32 %v1607, 0.0
  %v2058 = vmax.f32 %v1612, 0.0
  %v2059 = vmax.f32 %v1617, 0.0
  %v2060 = vmax.f32 %v1622, 0.0
  %v2061 = vmax.f32 %v1627, 0.0
  %v2062 = vmax.f32 %v1632, 0.0
  %v2063 = vmax.f32 %v1637, 0.0
  %v2064 = vmax.f32 %v1642, 0.0
  %v2065 = vmax.f32 %v1647, 0.0
  %v2066 = vmax.f32 %v1652, 0.0
  %v2067 = vmax.f32 %v1657, 0.0
  %v2068 = vmax.f32 %v1662, 0.0
  %v2069 = vmax.f32 %v1667, 0.0
  %v2070 = vmax.f32 %v1672, 0.0
  %v2071 = vmax.f32 %v1677, 0.0
  %v2072 = vmax.f32 %v1682, 0.0
  %v2073 = vmax.f32 %v1687, 0.0
  %v2074 = vmax.f32 %v1692, 0.0
  %v2075 = vmax.f32 %v1697, 0.0
  %v2076 = vmax.f32 %v1702, 0.0
  %v2077 = vmax.f32 %v1707, 0.0
  %v2078 = vmax.f32 %v1712, 0.0
  %v2079 = vmax.f32 %v1717, 0.0
  %v2080 = vmax.f32 %v1722, 0.0
  %v2081 = vmax.f32 %v1727, 0.0
  %v2082 = vmax.f32 %v1732, 0.0
  %v2083 = vmax.f32 %v1737, 0.0
  %v2084 = vmax.f32 %v1742, 0.0
  %v2085 = vmax.f32 %v1747, 0.0
  %v2086 = vmax.f32 %v1752, 0.0
  %v2087 = vmax.f32 %v1757, 0.0
  %v2088 = vmax.f32 %v1762, 0.0
  %v2089 = vmax.f32 %v1767, 0.0
  %v2090 = vmax.f32 %v1772, 0.0
  %v2091 = vmax.f32 %v1777, 0.0
  %v2092 = vmax.f32 %v1782, 0.0
  %v2093 = vmax.f32 %v1787, 0.0
  %v2094 = vmax.f32 %v1792, 0.0
  %v2095 = vmax.f32 %v1797, 0.0
  %v2096 = vmax.f32 %v1802, 0.0
  %v2097 = vmax.f32 %v1807, 0.0
  %v2098 = vmax.f32 %v1812, 0.0
  %v2099 = vmax.f32 %v1817, 0.0
  %v2100 = vmax.f32 %v1822, 0.0
  %v2101 = vmax.f32 %v1827, 0.0
  %v2102 = vmax.f32 %v1832, 0.0
  %v2103 = vmax.f32 %v1837, 0.0
  %v2104 = vmax.f32 %v1842, 0.0
  %v2105 = vmax.f32 %v1847, 0.0
  %v2106 = vmax.f32 %v1852, 0.0
  %v2107 = vmax.f32 %v1857, 0.0
  %v2108 = vmax.f32 %v1862, 0.0
  %v2109 = vmax.f32 %v1867, 0.0
  %v2110 = vmax.f32 %v1872, 0.0
  %v2111 = vmax.f32 %v1877, 0.0
  %v2112 = vmax.f32 %v1882, 0.0
  %v2113 = vmax.f32 %v1887, 0.0
  %v2114 = vmax.f32 %v1892, 0.0
  %v2115 = vmax.f32 %v1897, 0.0
  %v2116 = vmax.f32 %v1902, 0.0
  %v2117 = vmax.f32 %v1907, 0.0
  %v2118 = vmax.f32 %v1912, 0.0
  %v2119 = vmax.f32 %v1917, 0.0
  %v2120 = vmax.f32 %v1922, 0.0
  %v2121 = vmax.f32 %v1927, 0.0
  %v2122 = vmax.f32 %v1932, 0.0
  %v2123 = vmax.f32 %v1937, 0.0
  %v2124 = vmax.f32 %v1942, 0.0
  %v2125 = vmax.f32 %v1947, 0.0
  %v2126 = vmax.f32 %v1952, 0.0
  %v2127 = vmax.f32 %v1957, 0.0
  %v2128 = vmax.f32 %v1962, 0.0
  %v2129 = vmax.f32 %v1967, 0.0
  %v2130 = vmax.f32 %v1972, 0.0
  %v2131 = vmax.f32 %v1977, 0.0
  %v2132 = vmax.f32 %v1982, 0.0
  %v2133 = vmax.f32 %v1987, 0.0
  %v2134 = vmax.f32 %v1992, 0.0
  %v2135 = vmax.f32 %v1997, 0.0
  %v2136 = vmax.f32 %v2002, 0.0
  %v2137 = vmax.f32 %v2007, 0.0
  %v2138 = vld [vmem:[%s3] sm:$0xff]
  %v2139 = vld [vmem:[%s3 + $0x8] sm:$0xff]
  %v2140 = vld [vmem:[%s3 + $0x10] sm:$0xff]
  %v2141 = vld [vmem:[%s3 + $0x18] sm:$0xff]
  %v2142 = vld [vmem:[%s3 + $0x20] sm:$0xff]
  %v2143 = vld [vmem:[%s3 + $0x28] sm:$0xff]
  %v2144 = vld [vmem:[%s3 + $0x30] sm:$0xff]
  %v2145 = vld [vmem:[%s3 + $0x38] sm:$0xff]
  %v2146 = vld [vmem:[%s3 + $0x40] sm:$0xff]
  %v2147 = vld [vmem:[%s3 + $0x48] sm:$0xff]
  %v2148 = vld [vmem:[%s3 + $0x50] sm:$0xff]
  %v2149 = vld [vmem:[%s3 + $0x58] sm:$0xff]
  %v2150 = vld [vmem:[%s3 + $0x60] sm:$0xff]
  %v2151 = vld [vmem:[%s3 + $0x68] sm:$0xff]
  %v2152 = vld [vmem:[%s3 + $0x70] sm:$0xff]
  %v2153 = vld [vmem:[%s3 + $0x78] sm:$0xff]
  %v2154 = vld [vmem:[%s3 + $0x80] sm:$0xff]
  %v2155 = vld [vmem:[%s3 + $0x88] sm:$0xff]
  %v2156 = vld [vmem:[%s3 + $0x90] sm:$0xff]
  %v2157 = vld [vmem:[%s3 + $0x98] sm:$0xff]
  %v2158 = vld [vmem:[%s3 + $0xa0] sm:$0xff]
  %v2159 = vld [vmem:[%s3 + $0xa8] sm:$0xff]
  %v2160 = vld [vmem:[%s3 + $0xb0] sm:$0xff]
  %v2161 = vld [vmem:[%s3 + $0xb8] sm:$0xff]
  %v2162 = vld [vmem:[%s3 + $0xc0] sm:$0xff]
  %v2163 = vld [vmem:[%s3 + $0xc8] sm:$0xff]
  %v2164 = vld [vmem:[%s3 + $0xd0] sm:$0xff]
  %v2165 = vld [vmem:[%s3 + $0xd8] sm:$0xff]
  %v2166 = vld [vmem:[%s3 + $0xe0] sm:$0xff]
  %v2167 = vld [vmem:[%s3 + $0xe8] sm:$0xff]
  %v2168 = vld [vmem:[%s3 + $0xf0] sm:$0xff]
  %v2169 = vld [vmem:[%s3 + $0xf8] sm:$0xff]
  %v2170 = vld [vmem:[%s3 + $0x100] sm:$0xff]
  %v2171 = vld [vmem:[%s3 + $0x108] sm:$0xff]
  %v2172 = vld [vmem:[%s3 + $0x110] sm:$0xff]
  %v2173 = vld [vmem:[%s3 + $0x118] sm:$0xff]
  %v2174 = vld [vmem:[%s3 + $0x120] sm:$0xff]
  %v2175 = vld [vmem:[%s3 + $0x128] sm:$0xff]
  %v2176 = vld [vmem:[%s3 + $0x130] sm:$0xff]
  %v2177 = vld [vmem:[%s3 + $0x138] sm:$0xff]
  %v2178 = vld [vmem:[%s3 + $0x140] sm:$0xff]
  %v2179 = vld [vmem:[%s3 + $0x148] sm:$0xff]
  %v2180 = vld [vmem:[%s3 + $0x150] sm:$0xff]
  %v2181 = vld [vmem:[%s3 + $0x158] sm:$0xff]
  %v2182 = vld [vmem:[%s3 + $0x160] sm:$0xff]
  %v2183 = vld [vmem:[%s3 + $0x168] sm:$0xff]
  %v2184 = vld [vmem:[%s3 + $0x170] sm:$0xff]
  %v2185 = vld [vmem:[%s3 + $0x178] sm:$0xff]
  %v2186 = vld [vmem:[%s3 + $0x180] sm:$0xff]
  %v2187 = vld [vmem:[%s3 + $0x188] sm:$0xff]
  %v2188 = vld [vmem:[%s3 + $0x190] sm:$0xff]
  %v2189 = vld [vmem:[%s3 + $0x198] sm:$0xff]
  %v2190 = vld [vmem:[%s3 + $0x1a0] sm:$0xff]
  %v2191 = vld [vmem:[%s3 + $0x1a8] sm:$0xff]
  %v2192 = vld [vmem:[%s3 + $0x1b0] sm:$0xff]
  %v2193 = vld [vmem:[%s3 + $0x1b8] sm:$0xff]
  %v2194 = vld [vmem:[%s3 + $0x1c0] sm:$0xff]
  %v2195 = vld [vmem:[%s3 + $0x1c8] sm:$0xff]
  %v2196 = vld [vmem:[%s3 + $0x1d0] sm:$0xff]
  %v2197 = vld [vmem:[%s3 + $0x1d8] sm:$0xff]
  %v2198 = vld [vmem:[%s3 + $0x1e0] sm:$0xff]
  %v2199 = vld [vmem:[%s3 + $0x1e8] sm:$0xff]
  %v2200 = vld [vmem:[%s3 + $0x1f0] sm:$0xff]
  %v2201 = vld [vmem:[%s3 + $0x1f8] sm:$0xff]
  %v2202 = vld [vmem:[%s3 + $0x200] sm:$0xff]
  %v2203 = vld [vmem:[%s3 + $0x208] sm:$0xff]
  %v2204 = vld [vmem:[%s3 + $0x210] sm:$0xff]
  %v2205 = vld [vmem:[%s3 + $0x218] sm:$0xff]
  %v2206 = vld [vmem:[%s3 + $0x220] sm:$0xff]
  %v2207 = vld [vmem:[%s3 + $0x228] sm:$0xff]
  %v2208 = vld [vmem:[%s3 + $0x230] sm:$0xff]
  %v2209 = vld [vmem:[%s3 + $0x238] sm:$0xff]
  %v2210 = vld [vmem:[%s3 + $0x240] sm:$0xff]
  %v2211 = vld [vmem:[%s3 + $0x248] sm:$0xff]
  %v2212 = vld [vmem:[%s3 + $0x250] sm:$0xff]
  %v2213 = vld [vmem:[%s3 + $0x258] sm:$0xff]
  %v2214 = vld [vmem:[%s3 + $0x260] sm:$0xff]
  %v2215 = vld [vmem:[%s3 + $0x268] sm:$0xff]
  %v2216 = vld [vmem:[%s3 + $0x270] sm:$0xff]
  %v2217 = vld [vmem:[%s3 + $0x278] sm:$0xff]
  %v2218 = vld [vmem:[%s3 + $0x280] sm:$0xff]
  %v2219 = vld [vmem:[%s3 + $0x288] sm:$0xff]
  %v2220 = vld [vmem:[%s3 + $0x290] sm:$0xff]
  %v2221 = vld [vmem:[%s3 + $0x298] sm:$0xff]
  %v2222 = vld [vmem:[%s3 + $0x2a0] sm:$0xff]
  %v2223 = vld [vmem:[%s3 + $0x2a8] sm:$0xff]
  %v2224 = vld [vmem:[%s3 + $0x2b0] sm:$0xff]
  %v2225 = vld [vmem:[%s3 + $0x2b8] sm:$0xff]
  %v2226 = vld [vmem:[%s3 + $0x2c0] sm:$0xff]
  %v2227 = vld [vmem:[%s3 + $0x2c8] sm:$0xff]
  %v2228 = vld [vmem:[%s3 + $0x2d0] sm:$0xff]
  %v2229 = vld [vmem:[%s3 + $0x2d8] sm:$0xff]
  %v2230 = vld [vmem:[%s3 + $0x2e0] sm:$0xff]
  %v2231 = vld [vmem:[%s3 + $0x2e8] sm:$0xff]
  %v2232 = vld [vmem:[%s3 + $0x2f0] sm:$0xff]
  %v2233 = vld [vmem:[%s3 + $0x2f8] sm:$0xff]
  %v2234 = vld [vmem:[%s3 + $0x300] sm:$0xff]
  %v2235 = vld [vmem:[%s3 + $0x308] sm:$0xff]
  %v2236 = vld [vmem:[%s3 + $0x310] sm:$0xff]
  %v2237 = vld [vmem:[%s3 + $0x318] sm:$0xff]
  %v2238 = vld [vmem:[%s3 + $0x320] sm:$0xff]
  %v2239 = vld [vmem:[%s3 + $0x328] sm:$0xff]
  %v2240 = vld [vmem:[%s3 + $0x330] sm:$0xff]
  %v2241 = vld [vmem:[%s3 + $0x338] sm:$0xff]
  %v2242 = vld [vmem:[%s3 + $0x340] sm:$0xff]
  %v2243 = vld [vmem:[%s3 + $0x348] sm:$0xff]
  %v2244 = vld [vmem:[%s3 + $0x350] sm:$0xff]
  %v2245 = vld [vmem:[%s3 + $0x358] sm:$0xff]
  %v2246 = vld [vmem:[%s3 + $0x360] sm:$0xff]
  %v2247 = vld [vmem:[%s3 + $0x368] sm:$0xff]
  %v2248 = vld [vmem:[%s3 + $0x370] sm:$0xff]
  %v2249 = vld [vmem:[%s3 + $0x378] sm:$0xff]
  %v2250 = vld [vmem:[%s3 + $0x380] sm:$0xff]
  %v2251 = vld [vmem:[%s3 + $0x388] sm:$0xff]
  %v2252 = vld [vmem:[%s3 + $0x390] sm:$0xff]
  %v2253 = vld [vmem:[%s3 + $0x398] sm:$0xff]
  %v2254 = vld [vmem:[%s3 + $0x3a0] sm:$0xff]
  %v2255 = vld [vmem:[%s3 + $0x3a8] sm:$0xff]
  %v2256 = vld [vmem:[%s3 + $0x3b0] sm:$0xff]
  %v2257 = vld [vmem:[%s3 + $0x3b8] sm:$0xff]
  %v2258 = vld [vmem:[%s3 + $0x3c0] sm:$0xff]
  %v2259 = vld [vmem:[%s3 + $0x3c8] sm:$0xff]
  %v2260 = vld [vmem:[%s3 + $0x3d0] sm:$0xff]
  %v2261 = vld [vmem:[%s3 + $0x3d8] sm:$0xff]
  %v2262 = vld [vmem:[%s3 + $0x3e0] sm:$0xff]
  %v2263 = vld [vmem:[%s3 + $0x3e8] sm:$0xff]
  %v2264 = vld [vmem:[%s3 + $0x3f0] sm:$0xff]
  %v2265 = vld [vmem:[%s3 + $0x3f8] sm:$0xff]
  %v2266 = vld [vmem:[%s4] sm:$0xff]
  %v2267 = vld [vmem:[%s4 + $0x8] sm:$0xff]
  %v2268 = vld [vmem:[%s4 + $0x10] sm:$0xff]
  %v2269 = vld [vmem:[%s4 + $0x18] sm:$0xff]
  %v2270 = vld [vmem:[%s4 + $0x20] sm:$0xff]
  %v2271 = vld [vmem:[%s4 + $0x28] sm:$0xff]
  %v2272 = vld [vmem:[%s4 + $0x30] sm:$0xff]
  %v2273 = vld [vmem:[%s4 + $0x38] sm:$0xff]
  %v2274 = vld [vmem:[%s4 + $0x40] sm:$0xff]
  %v2275 = vld [vmem:[%s4 + $0x48] sm:$0xff]
  %v2276 = vld [vmem:[%s4 + $0x50] sm:$0xff]
  %v2277 = vld [vmem:[%s4 + $0x58] sm:$0xff]
  %v2278 = vld [vmem:[%s4 + $0x60] sm:$0xff]
  %v2279 = vld [vmem:[%s4 + $0x68] sm:$0xff]
  %v2280 = vld [vmem:[%s4 + $0x70] sm:$0xff]
  %v2281 = vld [vmem:[%s4 + $0x78] sm:$0xff]
  %2283 = vset.pattern.permute.xlu0 0
  %2284 = vperm.xlu0 %2283, %v2266
  %v2285 = vpop.permute.xlu0 %2284
  %2288 = vset.pattern.permute.xlu0 0
  %2289 = vperm.xlu0 %2288, %v2267
  %v2290 = vpop.permute.xlu0 %2289
  %2293 = vset.pattern.permute.xlu0 0
  %2294 = vperm.xlu0 %2293, %v2268
  %v2295 = vpop.permute.xlu0 %2294
  %2298 = vset.pattern.permute.xlu0 0
  %2299 = vperm.xlu0 %2298, %v2269
  %v2300 = vpop.permute.xlu0 %2299
  %2303 = vset.pattern.permute.xlu0 0
  %2304 = vperm.xlu0 %2303, %v2270
  %v2305 = vpop.permute.xlu0 %2304
  %2308 = vset.pattern.permute.xlu0 0
  %2309 = vperm.xlu0 %2308, %v2271
  %v2310 = vpop.permute.xlu0 %2309
  %2313 = vset.pattern.permute.xlu0 0
  %2314 = vperm.xlu0 %2313, %v2272
  %v2315 = vpop.permute.xlu0 %2314
  %2318 = vset.pattern.permute.xlu0 0
  %2319 = vperm.xlu0 %2318, %v2273
  %v2320 = vpop.permute.xlu0 %2319
  %2323 = vset.pattern.permute.xlu0 0
  %2324 = vperm.xlu0 %2323, %v2274
  %v2325 = vpop.permute.xlu0 %2324
  %2328 = vset.pattern.permute.xlu0 0
  %2329 = vperm.xlu0 %2328, %v2275
  %v2330 = vpop.permute.xlu0 %2329
  %2333 = vset.pattern.permute.xlu0 0
  %2334 = vperm.xlu0 %2333, %v2276
  %v2335 = vpop.permute.xlu0 %2334
  %2338 = vset.pattern.permute.xlu0 0
  %2339 = vperm.xlu0 %2338, %v2277
  %v2340 = vpop.permute.xlu0 %2339
  %2343 = vset.pattern.permute.xlu0 0
  %2344 = vperm.xlu0 %2343, %v2278
  %v2345 = vpop.permute.xlu0 %2344
  %2348 = vset.pattern.permute.xlu0 0
  %2349 = vperm.xlu0 %2348, %v2279
  %v2350 = vpop.permute.xlu0 %2349
  %2353 = vset.pattern.permute.xlu0 0
  %2354 = vperm.xlu0 %2353, %v2280
  %v2355 = vpop.permute.xlu0 %2354
  %2358 = vset.pattern.permute.xlu0 0
  %2359 = vperm.xlu0 %2358, %v2281
  %v2360 = vpop.permute.xlu0 %2359
  %2362 = vmatprep.subr.mxu0 0.0
  %2363 = vmatpush1.msra.mxu0 %v2010
  %2364 = vmatprep.subr.mxu0 0.0
  %2365 = vmatpush1.msra.mxu0 %v2011
  %2366 = vmatprep.subr.mxu0 0.0
  %2367 = vmatpush1.msra.mxu0 %v2012
  %2368 = vmatprep.subr.mxu0 0.0
  %2369 = vmatpush1.msra.mxu0 %v2013
  %2370 = vmatprep.subr.mxu0 0.0
  %2371 = vmatpush1.msra.mxu0 %v2014
  %2372 = vmatprep.subr.mxu0 0.0
  %2373 = vmatpush1.msra.mxu0 %v2015
  %2374 = vmatprep.subr.mxu0 0.0
  %2375 = vmatpush1.msra.mxu0 %v2016
  %2376 = vmatprep.subr.mxu0 0.0
  %2377 = vmatpush1.msra.mxu0 %v2017
  %2378 = vmatprep.subr.mxu0 0.0
  %2379 = vmatpush1.msra.mxu0 %v2018
  %2380 = vmatprep.subr.mxu0 0.0
  %2381 = vmatpush1.msra.mxu0 %v2019
  %2382 = vmatprep.subr.mxu0 0.0
  %2383 = vmatpush1.msra.mxu0 %v2020
  %2384 = vmatprep.subr.mxu0 0.0
  %2385 = vmatpush1.msra.mxu0 %v2021
  %2386 = vmatprep.subr.mxu0 0.0
  %2387 = vmatpush1.msra.mxu0 %v2022
  %2388 = vmatprep.subr.mxu0 0.0
  %2389 = vmatpush1.msra.mxu0 %v2023
  %2390 = vmatprep.subr.mxu0 0.0
  %2391 = vmatpush1.msra.mxu0 %v2024
  %2392 = vmatprep.subr.mxu0 0.0
  %2393 = vmatpush1.msra.mxu0 %v2025
  %2394 = vmatprep.subr.mxu0 0.0
  %2395 = vmatpush1.msra.mxu0 %v2026
  %2396 = vmatprep.subr.mxu0 0.0
  %2397 = vmatpush1.msra.mxu0 %v2027
  %2398 = vmatprep.subr.mxu0 0.0
  %2399 = vmatpush1.msra.mxu0 %v2028
  %2400 = vmatprep.subr.mxu0 0.0
  %2401 = vmatpush1.msra.mxu0 %v2029
  %2402 = vmatprep.subr.mxu0 0.0
  %2403 = vmatpush1.msra.mxu0 %v2030
  %2404 = vmatprep.subr.mxu0 0.0
  %2405 = vmatpush1.msra.mxu0 %v2031
  %2406 = vmatprep.subr.mxu0 0.0
  %2407 = vmatpush1.msra.mxu0 %v2032
  %2408 = vmatprep.subr.mxu0 0.0
  %2409 = vmatpush1.msra.mxu0 %v2033
  %2410 = vmatprep.subr.mxu0 0.0
  %2411 = vmatpush1.msra.mxu0 %v2034
  %2412 = vmatprep.subr.mxu0 0.0
  %2413 = vmatpush1.msra.mxu0 %v2035
  %2414 = vmatprep.subr.mxu0 0.0
  %2415 = vmatpush1.msra.mxu0 %v2036
  %2416 = vmatprep.subr.mxu0 0.0
  %2417 = vmatpush1.msra.mxu0 %v2037
  %2418 = vmatprep.subr.mxu0 0.0
  %2419 = vmatpush1.msra.mxu0 %v2038
  %2420 = vmatprep.subr.mxu0 0.0
  %2421 = vmatpush1.msra.mxu0 %v2039
  %2422 = vmatprep.subr.mxu0 0.0
  %2423 = vmatpush1.msra.mxu0 %v2040
  %2424 = vmatprep.subr.mxu0 0.0
  %2425 = vmatpush1.msra.mxu0 %v2041
  %2426 = vmatprep.mubr.f32.mxu0 %v2139
  %2427 = vmatmul.mubr.f32.gmra.mrb[0].mxu0 %v2138
  %v2428 = vpop.f32.mrb[0].mxu0
  %v2429 = vadd.f32 %v2285, %v2428
  %v2430 = vpop.f32.mrb[0].mxu0
  %2431 = vmatprep.mubr.f32.mxu0 %v2147
  %2432 = vmatmul.mubr.f32.gmra.mrb[0].mxu0 %v2146
  %v2433 = vpop.f32.mrb[0].mxu0
  %v2434 = vadd.f32 %v2290, %v2433
  %v2435 = vpop.f32.mrb[0].mxu0
  %2436 = vmatprep.mubr.f32.mxu0 %v2155
  %2437 = vmatmul.mubr.f32.gmra.mrb[0].mxu0 %v2154
  %v2438 = vpop.f32.mrb[0].mxu0
  %v2439 = vadd.f32 %v2295, %v2438
  %v2440 = vpop.f32.mrb[0].mxu0
  %2441 = vmatprep.mubr.f32.mxu0 %v2163
  %2442 = vmatmul.mubr.f32.gmra.mrb[0].mxu0 %v2162
  %v2443 = vpop.f32.mrb[0].mxu0
  %v2444 = vadd.f32 %v2300, %v2443
  %v2445 = vpop.f32.mrb[0].mxu0
  %2446 = vmatprep.mubr.f32.mxu0 %v2171
  %2447 = vmatmul.mubr.f32.gmra.mrb[0].mxu0 %v2170
  %v2448 = vpop.f32.mrb[0].mxu0
  %v2449 = vadd.f32 %v2305, %v2448
  %v2450 = vpop.f32.mrb[0].mxu0
  %2451 = vmatprep.mubr.f32.mxu0 %v2179
  %2452 = vmatmul.mubr.f32.gmra.mrb[0].mxu0 %v2178
  %v2453 = vpop.f32.mrb[0].mxu0
  %v2454 = vadd.f32 %v2310, %v2453
  %v2455 = vpop.f32.mrb[0].mxu0
  %2456 = vmatprep.mubr.f32.mxu0 %v2187
  %2457 = vmatmul.mubr.f32.gmra.mrb[0].mxu0 %v2186
  %v2458 = vpop.f32.mrb[0].mxu0
  %v2459 = vadd.f32 %v2315, %v2458
  %v2460 = vpop.f32.mrb[0].mxu0
  %2461 = vmatprep.mubr.f32.mxu0 %v2195
  %2462 = vmatmul.mubr.f32.gmra.mrb[0].mxu0 %v2194
  %v2463 = vpop.f32.mrb[0].mxu0
  %v2464 = vadd.f32 %v2320, %v2463
  %v2465 = vpop.f32.mrb[0].mxu0
  %2466 = vmatprep.mubr.f32.mxu0 %v2203
  %2467 = vmatmul.mubr.f32.gmra.mrb[0].mxu0 %v2202
  %v2468 = vpop.f32.mrb[0].mxu0
  %v2469 = vadd.f32 %v2325, %v2468
  %v2470 = vpop.f32.mrb[0].mxu0
  %2471 = vmatprep.mubr.f32.mxu0 %v2211
  %2472 = vmatmul.mubr.f32.gmra.mrb[0].mxu0 %v2210
  %v2473 = vpop.f32.mrb[0].mxu0
  %v2474 = vadd.f32 %v2330, %v2473
  %v2475 = vpop.f32.mrb[0].mxu0
  %2476 = vmatprep.mubr.f32.mxu0 %v2219
  %2477 = vmatmul.mubr.f32.gmra.mrb[0].mxu0 %v2218
  %v2478 = vpop.f32.mrb[0].mxu0
  %v2479 = vadd.f32 %v2335, %v2478
  %v2480 = vpop.f32.mrb[0].mxu0
  %2481 = vmatprep.mubr.f32.mxu0 %v2227
  %2482 = vmatmul.mubr.f32.gmra.mrb[0].mxu0 %v2226
  %v2483 = vpop.f32.mrb[0].mxu0
  %v2484 = vadd.f32 %v2340, %v2483
  %v2485 = vpop.f32.mrb[0].mxu0
  %2486 = vmatprep.mubr.f32.mxu0 %v2235
  %2487 = vmatmul.mubr.f32.gmra.mrb[0].mxu0 %v2234
  %v2488 = vpop.f32.mrb[0].mxu0
  %v2489 = vadd.f32 %v2345, %v2488
  %v2490 = vpop.f32.mrb[0].mxu0
  %2491 = vmatprep.mubr.f32.mxu0 %v2243
  %2492 = vmatmul.mubr.f32.gmra.mrb[0].mxu0 %v2242
  %v2493 = vpop.f32.mrb[0].mxu0
  %v2494 = vadd.f32 %v2350, %v2493
  %v2495 = vpop.f32.mrb[0].mxu0
  %2496 = vmatprep.mubr.f32.mxu0 %v2251
  %2497 = vmatmul.mubr.f32.gmra.mrb[0].mxu0 %v2250
  %v2498 = vpop.f32.mrb[0].mxu0
  %v2499 = vadd.f32 %v2355, %v2498
  %v2500 = vpop.f32.mrb[0].mxu0
  %2501 = vmatprep.mubr.f32.mxu0 %v2259
  %2502 = vmatmul.mubr.f32.gmra.mrb[0].mxu0 %v2258
  %v2503 = vpop.f32.mrb[0].mxu0
  %v2504 = vadd.f32 %v2360, %v2503
  %v2505 = vpop.f32.mrb[0].mxu0
  %2506 = vdwg.mxu0
  %2507 = vmatprep.subr.mxu0 0.0
  %2508 = vmatpush1.msra.mxu0 %v2042
  %2509 = vmatprep.subr.mxu0 0.0
  %2510 = vmatpush1.msra.mxu0 %v2043
  %2511 = vmatprep.subr.mxu0 0.0
  %2512 = vmatpush1.msra.mxu0 %v2044
  %2513 = vmatprep.subr.mxu0 0.0
  %2514 = vmatpush1.msra.mxu0 %v2045
  %2515 = vmatprep.subr.mxu0 0.0
  %2516 = vmatpush1.msra.mxu0 %v2046
  %2517 = vmatprep.subr.mxu0 0.0
  %2518 = vmatpush1.msra.mxu0 %v2047
  %2519 = vmatprep.subr.mxu0 0.0
  %2520 = vmatpush1.msra.mxu0 %v2048
  %2521 = vmatprep.subr.mxu0 0.0
  %2522 = vmatpush1.msra.mxu0 %v2049
  %2523 = vmatprep.subr.mxu0 0.0
  %2524 = vmatpush1.msra.mxu0 %v2050
  %2525 = vmatprep.subr.mxu0 0.0
  %2526 = vmatpush1.msra.mxu0 %v2051
  %2527 = vmatprep.subr.mxu0 0.0
  %2528 = vmatpush1.msra.mxu0 %v2052
  %2529 = vmatprep.subr.mxu0 0.0
  %2530 = vmatpush1.msra.mxu0 %v2053
  %2531 = vmatprep.subr.mxu0 0.0
  %2532 = vmatpush1.msra.mxu0 %v2054
  %2533 = vmatprep.subr.mxu0 0.0
  %2534 = vmatpush1.msra.mxu0 %v2055
  %2535 = vmatprep.subr.mxu0 0.0
  %2536 = vmatpush1.msra.mxu0 %v2056
  %2537 = vmatprep.subr.mxu0 0.0
  %2538 = vmatpush1.msra.mxu0 %v2057
  %2539 = vmatprep.subr.mxu0 0.0
  %2540 = vmatpush1.msra.mxu0 %v2058
  %2541 = vmatprep.subr.mxu0 0.0
  %2542 = vmatpush1.msra.mxu0 %v2059
  %2543 = vmatprep.subr.mxu0 0.0
  %2544 = vmatpush1.msra.mxu0 %v2060
  %2545 = vmatprep.subr.mxu0 0.0
  %2546 = vmatpush1.msra.mxu0 %v2061
  %2547 = vmatprep.subr.mxu0 0.0
  %2548 = vmatpush1.msra.mxu0 %v2062
  %2549 = vmatprep.subr.mxu0 0.0
  %2550 = vmatpush1.msra.mxu0 %v2063
  %2551 = vmatprep.subr.mxu0 0.0
  %2552 = vmatpush1.msra.mxu0 %v2064
  %2553 = vmatprep.subr.mxu0 0.0
  %2554 = vmatpush1.msra.mxu0 %v2065
  %2555 = vmatprep.subr.mxu0 0.0
  %2556 = vmatpush1.msra.mxu0 %v2066
  %2557 = vmatprep.subr.mxu0 0.0
  %2558 = vmatpush1.msra.mxu0 %v2067
  %2559 = vmatprep.subr.mxu0 0.0
  %2560 = vmatpush1.msra.mxu0 %v2068
  %2561 = vmatprep.subr.mxu0 0.0
  %2562 = vmatpush1.msra.mxu0 %v2069
  %2563 = vmatprep.subr.mxu0 0.0
  %2564 = vmatpush1.msra.mxu0 %v2070
  %2565 = vmatprep.subr.mxu0 0.0
  %2566 = vmatpush1.msra.mxu0 %v2071
  %2567 = vmatprep.subr.mxu0 0.0
  %2568 = vmatpush1.msra.mxu0 %v2072
  %2569 = vmatprep.subr.mxu0 0.0
  %2570 = vmatpush1.msra.mxu0 %v2073
  %2571 = vmatprep.mubr.f32.mxu0 %v2141
  %2572 = vmatmul.mubr.f32.gmra.mrb[0].mxu0 %v2140
  %v2573 = vpop.f32.mrb[0].mxu0
  %v2574 = vadd.f32 %v2429, %v2573
  %v2575 = vpop.f32.mrb[0].mxu0
  %2576 = vmatprep.mubr.f32.mxu0 %v2149
  %2577 = vmatmul.mubr.f32.gmra.mrb[0].mxu0 %v2148
  %v2578 = vpop.f32.mrb[0].mxu0
  %v2579 = vadd.f32 %v2434, %v2578
  %v2580 = vpop.f32.mrb[0].mxu0
  %2581 = vmatprep.mubr.f32.mxu0 %v2157
  %2582 = vmatmul.mubr.f32.gmra.mrb[0].mxu0 %v2156
  %v2583 = vpop.f32.mrb[0].mxu0
  %v2584 = vadd.f32 %v2439, %v2583
  %v2585 = vpop.f32.mrb[0].mxu0
  %2586 = vmatprep.mubr.f32.mxu0 %v2165
  %2587 = vmatmul.mubr.f32.gmra.mrb[0].mxu0 %v2164
  %v2588 = vpop.f32.mrb[0].mxu0
  %v2589 = vadd.f32 %v2444, %v2588
  %v2590 = vpop.f32.mrb[0].mxu0
  %2591 = vmatprep.mubr.f32.mxu0 %v2173
  %2592 = vmatmul.mubr.f32.gmra.mrb[0].mxu0 %v2172
  %v2593 = vpop.f32.mrb[0].mxu0
  %v2594 = vadd.f32 %v2449, %v2593
  %v2595 = vpop.f32.mrb[0].mxu0
  %2596 = vmatprep.mubr.f32.mxu0 %v2181
  %2597 = vmatmul.mubr.f32.gmra.mrb[0].mxu0 %v2180
  %v2598 = vpop.f32.mrb[0].mxu0
  %v2599 = vadd.f32 %v2454, %v2598
  %v2600 = vpop.f32.mrb[0].mxu0
  %2601 = vmatprep.mubr.f32.mxu0 %v2189
  %2602 = vmatmul.mubr.f32.gmra.mrb[0].mxu0 %v2188
  %v2603 = vpop.f32.mrb[0].mxu0
  %v2604 = vadd.f32 %v2459, %v2603
  %v2605 = vpop.f32.mrb[0].mxu0
  %2606 = vmatprep.mubr.f32.mxu0 %v2197
  %2607 = vmatmul.mubr.f32.gmra.mrb[0].mxu0 %v2196
  %v2608 = vpop.f32.mrb[0].mxu0
  %v2609 = vadd.f32 %v2464, %v2608
  %v2610 = vpop.f32.mrb[0].mxu0
  %2611 = vmatprep.mubr.f32.mxu0 %v2205
  %2612 = vmatmul.mubr.f32.gmra.mrb[0].mxu0 %v2204
  %v2613 = vpop.f32.mrb[0].mxu0
  %v2614 = vadd.f32 %v2469, %v2613
  %v2615 = vpop.f32.mrb[0].mxu0
  %2616 = vmatprep.mubr.f32.mxu0 %v2213
  %2617 = vmatmul.mubr.f32.gmra.mrb[0].mxu0 %v2212
  %v2618 = vpop.f32.mrb[0].mxu0
  %v2619 = vadd.f32 %v2474, %v2618
  %v2620 = vpop.f32.mrb[0].mxu0
  %2621 = vmatprep.mubr.f32.mxu0 %v2221
  %2622 = vmatmul.mubr.f32.gmra.mrb[0].mxu0 %v2220
  %v2623 = vpop.f32.mrb[0].mxu0
  %v2624 = vadd.f32 %v2479, %v2623
  %v2625 = vpop.f32.mrb[0].mxu0
  %2626 = vmatprep.mubr.f32.mxu0 %v2229
  %2627 = vmatmul.mubr.f32.gmra.mrb[0].mxu0 %v2228
  %v2628 = vpop.f32.mrb[0].mxu0
  %v2629 = vadd.f32 %v2484, %v2628
  %v2630 = vpop.f32.mrb[0].mxu0
  %2631 = vmatprep.mubr.f32.mxu0 %v2237
  %2632 = vmatmul.mubr.f32.gmra.mrb[0].mxu0 %v2236
  %v2633 = vpop.f32.mrb[0].mxu0
  %v2634 = vadd.f32 %v2489, %v2633
  %v2635 = vpop.f32.mrb[0].mxu0
  %2636 = vmatprep.mubr.f32.mxu0 %v2245
  %2637 = vmatmul.mubr.f32.gmra.mrb[0].mxu0 %v2244
  %v2638 = vpop.f32.mrb[0].mxu0
  %v2639 = vadd.f32 %v2494, %v2638
  %v2640 = vpop.f32.mrb[0].mxu0
  %2641 = vmatprep.mubr.f32.mxu0 %v2253
  %2642 = vmatmul.mubr.f32.gmra.mrb[0].mxu0 %v2252
  %v2643 = vpop.f32.mrb[0].mxu0
  %v2644 = vadd.f32 %v2499, %v2643
  %v2645 = vpop.f32.mrb[0].mxu0
  %2646 = vmatprep.mubr.f32.mxu0 %v2261
  %2647 = vmatmul.mubr.f32.gmra.mrb[0].mxu0 %v2260
  %v2648 = vpop.f32.mrb[0].mxu0
  %v2649 = vadd.f32 %v2504, %v2648
  %v2650 = vpop.f32.mrb[0].mxu0
  %2651 = vdwg.mxu0
  %2652 = vmatprep.subr.mxu0 0.0
  %2653 = vmatpush1.msra.mxu0 %v2074
  %2654 = vmatprep.subr.mxu0 0.0
  %2655 = vmatpush1.msra.mxu0 %v2075
  %2656 = vmatprep.subr.mxu0 0.0
  %2657 = vmatpush1.msra.mxu0 %v2076
  %2658 = vmatprep.subr.mxu0 0.0
  %2659 = vmatpush1.msra.mxu0 %v2077
  %2660 = vmatprep.subr.mxu0 0.0
  %2661 = vmatpush1.msra.mxu0 %v2078
  %2662 = vmatprep.subr.mxu0 0.0
  %2663 = vmatpush1.msra.mxu0 %v2079
  %2664 = vmatprep.subr.mxu0 0.0
  %2665 = vmatpush1.msra.mxu0 %v2080
  %2666 = vmatprep.subr.mxu0 0.0
  %2667 = vmatpush1.msra.mxu0 %v2081
  %2668 = vmatprep.subr.mxu0 0.0
  %2669 = vmatpush1.msra.mxu0 %v2082
  %2670 = vmatprep.subr.mxu0 0.0
  %2671 = vmatpush1.msra.mxu0 %v2083
  %2672 = vmatprep.subr.mxu0 0.0
  %2673 = vmatpush1.msra.mxu0 %v2084
  %2674 = vmatprep.subr.mxu0 0.0
  %2675 = vmatpush1.msra.mxu0 %v2085
  %2676 = vmatprep.subr.mxu0 0.0
  %2677 = vmatpush1.msra.mxu0 %v2086
  %2678 = vmatprep.subr.mxu0 0.0
  %2679 = vmatpush1.msra.mxu0 %v2087
  %2680 = vmatprep.subr.mxu0 0.0
  %2681 = vmatpush1.msra.mxu0 %v2088
  %2682 = vmatprep.subr.mxu0 0.0
  %2683 = vmatpush1.msra.mxu0 %v2089
  %2684 = vmatprep.subr.mxu0 0.0
  %2685 = vmatpush1.msra.mxu0 %v2090
  %2686 = vmatprep.subr.mxu0 0.0
  %2687 = vmatpush1.msra.mxu0 %v2091
  %2688 = vmatprep.subr.mxu0 0.0
  %2689 = vmatpush1.msra.mxu0 %v2092
  %2690 = vmatprep.subr.mxu0 0.0
  %2691 = vmatpush1.msra.mxu0 %v2093
  %2692 = vmatprep.subr.mxu0 0.0
  %2693 = vmatpush1.msra.mxu0 %v2094
  %2694 = vmatprep.subr.mxu0 0.0
  %2695 = vmatpush1.msra.mxu0 %v2095
  %2696 = vmatprep.subr.mxu0 0.0
  %2697 = vmatpush1.msra.mxu0 %v2096
  %2698 = vmatprep.subr.mxu0 0.0
  %2699 = vmatpush1.msra.mxu0 %v2097
  %2700 = vmatprep.subr.mxu0 0.0
  %2701 = vmatpush1.msra.mxu0 %v2098
  %2702 = vmatprep.subr.mxu0 0.0
  %2703 = vmatpush1.msra.mxu0 %v2099
  %2704 = vmatprep.subr.mxu0 0.0
  %2705 = vmatpush1.msra.mxu0 %v2100
  %2706 = vmatprep.subr.mxu0 0.0
  %2707 = vmatpush1.msra.mxu0 %v2101
  %2708 = vmatprep.subr.mxu0 0.0
  %2709 = vmatpush1.msra.mxu0 %v2102
  %2710 = vmatprep.subr.mxu0 0.0
  %2711 = vmatpush1.msra.mxu0 %v2103
  %2712 = vmatprep.subr.mxu0 0.0
  %2713 = vmatpush1.msra.mxu0 %v2104
  %2714 = vmatprep.subr.mxu0 0.0
  %2715 = vmatpush1.msra.mxu0 %v2105
  %2716 = vmatprep.mubr.f32.mxu0 %v2143
  %2717 = vmatmul.mubr.f32.gmra.mrb[0].mxu0 %v2142
  %v2718 = vpop.f32.mrb[0].mxu0
  %v2719 = vadd.f32 %v2574, %v2718
  %v2720 = vpop.f32.mrb[0].mxu0
  %2721 = vmatprep.mubr.f32.mxu0 %v2151
  %2722 = vmatmul.mubr.f32.gmra.mrb[0].mxu0 %v2150
  %v2723 = vpop.f32.mrb[0].mxu0
  %v2724 = vadd.f32 %v2579, %v2723
  %v2725 = vpop.f32.mrb[0].mxu0
  %2726 = vmatprep.mubr.f32.mxu0 %v2159
  %2727 = vmatmul.mubr.f32.gmra.mrb[0].mxu0 %v2158
  %v2728 = vpop.f32.mrb[0].mxu0
  %v2729 = vadd.f32 %v2584, %v2728
  %v2730 = vpop.f32.mrb[0].mxu0
  %2731 = vmatprep.mubr.f32.mxu0 %v2167
  %2732 = vmatmul.mubr.f32.gmra.mrb[0].mxu0 %v2166
  %v2733 = vpop.f32.mrb[0].mxu0
  %v2734 = vadd.f32 %v2589, %v2733
  %v2735 = vpop.f32.mrb[0].mxu0
  %2736 = vmatprep.mubr.f32.mxu0 %v2175
  %2737 = vmatmul.mubr.f32.gmra.mrb[0].mxu0 %v2174
  %v2738 = vpop.f32.mrb[0].mxu0
  %v2739 = vadd.f32 %v2594, %v2738
  %v2740 = vpop.f32.mrb[0].mxu0
  %2741 = vmatprep.mubr.f32.mxu0 %v2183
  %2742 = vmatmul.mubr.f32.gmra.mrb[0].mxu0 %v2182
  %v2743 = vpop.f32.mrb[0].mxu0
  %v2744 = vadd.f32 %v2599, %v2743
  %v2745 = vpop.f32.mrb[0].mxu0
  %2746 = vmatprep.mubr.f32.mxu0 %v2191
  %2747 = vmatmul.mubr.f32.gmra.mrb[0].mxu0 %v2190
  %v2748 = vpop.f32.mrb[0].mxu0
  %v2749 = vadd.f32 %v2604, %v2748
  %v2750 = vpop.f32.mrb[0].mxu0
  %2751 = vmatprep.mubr.f32.mxu0 %v2199
  %2752 = vmatmul.mubr.f32.gmra.mrb[0].mxu0 %v2198
  %v2753 = vpop.f32.mrb[0].mxu0
  %v2754 = vadd.f32 %v2609, %v2753
  %v2755 = vpop.f32.mrb[0].mxu0
  %2756 = vmatprep.mubr.f32.mxu0 %v2207
  %2757 = vmatmul.mubr.f32.gmra.mrb[0].mxu0 %v2206
  %v2758 = vpop.f32.mrb[0].mxu0
  %v2759 = vadd.f32 %v2614, %v2758
  %v2760 = vpop.f32.mrb[0].mxu0
  %2761 = vmatprep.mubr.f32.mxu0 %v2215
  %2762 = vmatmul.mubr.f32.gmra.mrb[0].mxu0 %v2214
  %v2763 = vpop.f32.mrb[0].mxu0
  %v2764 = vadd.f32 %v2619, %v2763
  %v2765 = vpop.f32.mrb[0].mxu0
  %2766 = vmatprep.mubr.f32.mxu0 %v2223
  %2767 = vmatmul.mubr.f32.gmra.mrb[0].mxu0 %v2222
  %v2768 = vpop.f32.mrb[0].mxu0
  %v2769 = vadd.f32 %v2624, %v2768
  %v2770 = vpop.f32.mrb[0].mxu0
  %2771 = vmatprep.mubr.f32.mxu0 %v2231
  %2772 = vmatmul.mubr.f32.gmra.mrb[0].mxu0 %v2230
  %v2773 = vpop.f32.mrb[0].mxu0
  %v2774 = vadd.f32 %v2629, %v2773
  %v2775 = vpop.f32.mrb[0].mxu0
  %2776 = vmatprep.mubr.f32.mxu0 %v2239
  %2777 = vmatmul.mubr.f32.gmra.mrb[0].mxu0 %v2238
  %v2778 = vpop.f32.mrb[0].mxu0
  %v2779 = vadd.f32 %v2634, %v2778
  %v2780 = vpop.f32.mrb[0].mxu0
  %2781 = vmatprep.mubr.f32.mxu0 %v2247
  %2782 = vmatmul.mubr.f32.gmra.mrb[0].mxu0 %v2246
  %v2783 = vpop.f32.mrb[0].mxu0
  %v2784 = vadd.f32 %v2639, %v2783
  %v2785 = vpop.f32.mrb[0].mxu0
  %2786 = vmatprep.mubr.f32.mxu0 %v2255
  %2787 = vmatmul.mubr.f32.gmra.mrb[0].mxu0 %v2254
  %v2788 = vpop.f32.mrb[0].mxu0
  %v2789 = vadd.f32 %v2644, %v2788
  %v2790 = vpop.f32.mrb[0].mxu0
  %2791 = vmatprep.mubr.f32.mxu0 %v2263
  %2792 = vmatmul.mubr.f32.gmra.mrb[0].mxu0 %v2262
  %v2793 = vpop.f32.mrb[0].mxu0
  %v2794 = vadd.f32 %v2649, %v2793
  %v2795 = vpop.f32.mrb[0].mxu0
  %2796 = vdwg.mxu0
  %2797 = vmatprep.subr.mxu0 0.0
  %2798 = vmatpush1.msra.mxu0 %v2106
  %2799 = vmatprep.subr.mxu0 0.0
  %2800 = vmatpush1.msra.mxu0 %v2107
  %2801 = vmatprep.subr.mxu0 0.0
  %2802 = vmatpush1.msra.mxu0 %v2108
  %2803 = vmatprep.subr.mxu0 0.0
  %2804 = vmatpush1.msra.mxu0 %v2109
  %2805 = vmatprep.subr.mxu0 0.0
  %2806 = vmatpush1.msra.mxu0 %v2110
  %2807 = vmatprep.subr.mxu0 0.0
  %2808 = vmatpush1.msra.mxu0 %v2111
  %2809 = vmatprep.subr.mxu0 0.0
  %2810 = vmatpush1.msra.mxu0 %v2112
  %2811 = vmatprep.subr.mxu0 0.0
  %2812 = vmatpush1.msra.mxu0 %v2113
  %2813 = vmatprep.subr.mxu0 0.0
  %2814 = vmatpush1.msra.mxu0 %v2114
  %2815 = vmatprep.subr.mxu0 0.0
  %2816 = vmatpush1.msra.mxu0 %v2115
  %2817 = vmatprep.subr.mxu0 0.0
  %2818 = vmatpush1.msra.mxu0 %v2116
  %2819 = vmatprep.subr.mxu0 0.0
  %2820 = vmatpush1.msra.mxu0 %v2117
  %2821 = vmatprep.subr.mxu0 0.0
  %2822 = vmatpush1.msra.mxu0 %v2118
  %2823 = vmatprep.subr.mxu0 0.0
  %2824 = vmatpush1.msra.mxu0 %v2119
  %2825 = vmatprep.subr.mxu0 0.0
  %2826 = vmatpush1.msra.mxu0 %v2120
  %2827 = vmatprep.subr.mxu0 0.0
  %2828 = vmatpush1.msra.mxu0 %v2121
  %2829 = vmatprep.subr.mxu0 0.0
  %2830 = vmatpush1.msra.mxu0 %v2122
  %2831 = vmatprep.subr.mxu0 0.0
  %2832 = vmatpush1.msra.mxu0 %v2123
  %2833 = vmatprep.subr.mxu0 0.0
  %2834 = vmatpush1.msra.mxu0 %v2124
  %2835 = vmatprep.subr.mxu0 0.0
  %2836 = vmatpush1.msra.mxu0 %v2125
  %2837 = vmatprep.subr.mxu0 0.0
  %2838 = vmatpush1.msra.mxu0 %v2126
  %2839 = vmatprep.subr.mxu0 0.0
  %2840 = vmatpush1.msra.mxu0 %v2127
  %2841 = vmatprep.subr.mxu0 0.0
  %2842 = vmatpush1.msra.mxu0 %v2128
  %2843 = vmatprep.subr.mxu0 0.0
  %2844 = vmatpush1.msra.mxu0 %v2129
  %2845 = vmatprep.subr.mxu0 0.0
  %2846 = vmatpush1.msra.mxu0 %v2130
  %2847 = vmatprep.subr.mxu0 0.0
  %2848 = vmatpush1.msra.mxu0 %v2131
  %2849 = vmatprep.subr.mxu0 0.0
  %2850 = vmatpush1.msra.mxu0 %v2132
  %2851 = vmatprep.subr.mxu0 0.0
  %2852 = vmatpush1.msra.mxu0 %v2133
  %2853 = vmatprep.subr.mxu0 0.0
  %2854 = vmatpush1.msra.mxu0 %v2134
  %2855 = vmatprep.subr.mxu0 0.0
  %2856 = vmatpush1.msra.mxu0 %v2135
  %2857 = vmatprep.subr.mxu0 0.0
  %2858 = vmatpush1.msra.mxu0 %v2136
  %2859 = vmatprep.subr.mxu0 0.0
  %2860 = vmatpush1.msra.mxu0 %v2137
  %2861 = vmatprep.mubr.f32.mxu0 %v2145
  %2862 = vmatmul.mubr.f32.gmra.mrb[0].mxu0 %v2144
  %v2863 = vpop.f32.mrb[0].mxu0
  %v2864 = vadd.f32 %v2719, %v2863
  %v2865 = vpop.f32.mrb[0].mxu0
  %2866 = vmatprep.mubr.f32.mxu0 %v2153
  %2867 = vmatmul.mubr.f32.gmra.mrb[0].mxu0 %v2152
  %v2868 = vpop.f32.mrb[0].mxu0
  %v2869 = vadd.f32 %v2724, %v2868
  %v2870 = vpop.f32.mrb[0].mxu0
  %2871 = vmatprep.mubr.f32.mxu0 %v2161
  %2872 = vmatmul.mubr.f32.gmra.mrb[0].mxu0 %v2160
  %v2873 = vpop.f32.mrb[0].mxu0
  %v2874 = vadd.f32 %v2729, %v2873
  %v2875 = vpop.f32.mrb[0].mxu0
  %2876 = vmatprep.mubr.f32.mxu0 %v2169
  %2877 = vmatmul.mubr.f32.gmra.mrb[0].mxu0 %v2168
  %v2878 = vpop.f32.mrb[0].mxu0
  %v2879 = vadd.f32 %v2734, %v2878
  %v2880 = vpop.f32.mrb[0].mxu0
  %2881 = vmatprep.mubr.f32.mxu0 %v2177
  %2882 = vmatmul.mubr.f32.gmra.mrb[0].mxu0 %v2176
  %v2883 = vpop.f32.mrb[0].mxu0
  %v2884 = vadd.f32 %v2739, %v2883
  %v2885 = vpop.f32.mrb[0].mxu0
  %2886 = vmatprep.mubr.f32.mxu0 %v2185
  %2887 = vmatmul.mubr.f32.gmra.mrb[0].mxu0 %v2184
  %v2888 = vpop.f32.mrb[0].mxu0
  %v2889 = vadd.f32 %v2744, %v2888
  %v2890 = vpop.f32.mrb[0].mxu0
  %2891 = vmatprep.mubr.f32.mxu0 %v2193
  %2892 = vmatmul.mubr.f32.gmra.mrb[0].mxu0 %v2192
  %v2893 = vpop.f32.mrb[0].mxu0
  %v2894 = vadd.f32 %v2749, %v2893
  %v2895 = vpop.f32.mrb[0].mxu0
  %2896 = vmatprep.mubr.f32.mxu0 %v2201
  %2897 = vmatmul.mubr.f32.gmra.mrb[0].mxu0 %v2200
  %v2898 = vpop.f32.mrb[0].mxu0
  %v2899 = vadd.f32 %v2754, %v2898
  %v2900 = vpop.f32.mrb[0].mxu0
  %2901 = vmatprep.mubr.f32.mxu0 %v2209
  %2902 = vmatmul.mubr.f32.gmra.mrb[0].mxu0 %v2208
  %v2903 = vpop.f32.mrb[0].mxu0
  %v2904 = vadd.f32 %v2759, %v2903
  %v2905 = vpop.f32.mrb[0].mxu0
  %2906 = vmatprep.mubr.f32.mxu0 %v2217
  %2907 = vmatmul.mubr.f32.gmra.mrb[0].mxu0 %v2216
  %v2908 = vpop.f32.mrb[0].mxu0
  %v2909 = vadd.f32 %v2764, %v2908
  %v2910 = vpop.f32.mrb[0].mxu0
  %2911 = vmatprep.mubr.f32.mxu0 %v2225
  %2912 = vmatmul.mubr.f32.gmra.mrb[0].mxu0 %v2224
  %v2913 = vpop.f32.mrb[0].mxu0
  %v2914 = vadd.f32 %v2769, %v2913
  %v2915 = vpop.f32.mrb[0].mxu0
  %2916 = vmatprep.mubr.f32.mxu0 %v2233
  %2917 = vmatmul.mubr.f32.gmra.mrb[0].mxu0 %v2232
  %v2918 = vpop.f32.mrb[0].mxu0
  %v2919 = vadd.f32 %v2774, %v2918
  %v2920 = vpop.f32.mrb[0].mxu0
  %2921 = vmatprep.mubr.f32.mxu0 %v2241
  %2922 = vmatmul.mubr.f32.gmra.mrb[0].mxu0 %v2240
  %v2923 = vpop.f32.mrb[0].mxu0
  %v2924 = vadd.f32 %v2779, %v2923
  %v2925 = vpop.f32.mrb[0].mxu0
  %2926 = vmatprep.mubr.f32.mxu0 %v2249
  %2927 = vmatmul.mubr.f32.gmra.mrb[0].mxu0 %v2248
  %v2928 = vpop.f32.mrb[0].mxu0
  %v2929 = vadd.f32 %v2784, %v2928
  %v2930 = vpop.f32.mrb[0].mxu0
  %2931 = vmatprep.mubr.f32.mxu0 %v2257
  %2932 = vmatmul.mubr.f32.gmra.mrb[0].mxu0 %v2256
  %v2933 = vpop.f32.mrb[0].mxu0
  %v2934 = vadd.f32 %v2789, %v2933
  %v2935 = vpop.f32.mrb[0].mxu0
  %2936 = vmatprep.mubr.f32.mxu0 %v2265
  %2937 = vmatmul.mubr.f32.gmra.mrb[0].mxu0 %v2264
  %v2938 = vpop.f32.mrb[0].mxu0
  %v2939 = vadd.f32 %v2794, %v2938
  %v2940 = vpop.f32.mrb[0].mxu0
  %2941 = vdwg.mxu0
  %v2942 = vmul.f32 %v2864, 1.442695
  %v2943 = vpow.pop %v2942
  %v2944 = vmul.f32 %v2869, 1.442695
  %v2945 = vpow.pop %v2944
  %v2946 = vmul.f32 %v2874, 1.442695
  %v2947 = vpow.pop %v2946
  %v2948 = vmul.f32 %v2879, 1.442695
  %v2949 = vpow.pop %v2948
  %v2950 = vmul.f32 %v2884, 1.442695
  %v2951 = vpow.pop %v2950
  %v2952 = vmul.f32 %v2889, 1.442695
  %v2953 = vpow.pop %v2952
  %v2954 = vmul.f32 %v2894, 1.442695
  %v2955 = vpow.pop %v2954
  %v2956 = vmul.f32 %v2899, 1.442695
  %v2957 = vpow.pop %v2956
  %v2958 = vmul.f32 %v22, %v2943
  %v2959 = vmul.f32 %v23, %v2945
  %v2960 = vadd.f32 %v2958, %v2904
  %v2961 = vadd.f32 %v2959, %v2909
  %v2962 = vmul.f32 %v2960, %v2947
  %v2963 = vmul.f32 %v2961, %v2949
  %v2964 = vadd.f32 %v2962, %v2914
  %v2965 = vadd.f32 %v2963, %v2919
  %v2966 = vmul.f32 %v2964, %v2951
  %v2967 = vmul.f32 %v2965, %v2953
  %v2968 = vadd.f32 %v2966, %v2924
  %v2969 = vadd.f32 %v2967, %v2929
  %v2970 = vmul.f32 %v2968, %v2955
  %v2971 = vmul.f32 %v2969, %v2957
  %v2972 = vadd.f32 %v2970, %v2934
  %v2973 = vadd.f32 %v2971, %v2939
  %vm2974 = vcmask 64512
  %2975 = vst.msk [vmem:[%s5] sm:$0xff] %vm2974, %v20
  %2976 = vst.msk [vmem:[%s5 + $0x8] sm:$0xff] %vm2974, %v21
  %2977 = vst.msk [vmem:[%s5 + $0x10] sm:$0xff] %vm2974, %v2972
  %2978 = vst.msk [vmem:[%s5 + $0x18] sm:$0xff] %vm2974, %v2973
  // Predicated region
  $region22: #{tpu_custom_call.1} parent=0 // pred_check
    _
  $region23: #{tpu_custom_call.1} parent=0 // pred_check_branch
    %2980 = sbr.rel (0) target = $region25
  $region24: #{tpu_custom_call.1} parent=0 // pred_region
    _
  $region25: #{tpu_custom_call.1} parent=0 // pred_fallthru
    _
  // Predicated region
  $region26: #{tpu_custom_call.1} parent=0 // pred_check
    _
  $region27: #{tpu_custom_call.1} parent=0 // pred_check_branch
    %2982 = sbr.rel (0) target = $region29
  $region28: #{tpu_custom_call.1} parent=0 // pred_region
    _
  $region29: #{tpu_custom_call.1} parent=0 // pred_fallthru
    _

</llo_original>
